<compile_context>
chip_gen: v5e
topology: v5e:2x2
jax: 0.10.0
libtpu: 0.0.40
codegen_flags: <defaults>
</compile_context>

<pallas_src>
import functools

import jax
import jax.numpy as jnp
from jax import lax
from jax.experimental import pallas as pl
from jax.experimental.pallas import tpu as pltpu

LANES = 128       # feature width every layer is padded to (lane-full matmuls)
EDGE_TILE = 128   # edges per scoring grid step (lane-dense score stores)
FIN_PAD = 8       # padded input-feature width (3 -> 8)


def _round_up(v, m):
    return (v + m - 1) // m * m


def _pick_tile(n_pad, pref):
    """Largest multiple of 128 that divides n_pad and is <= pref."""
    t = min(pref, n_pad)
    while n_pad % t:
        t -= LANES
    return max(t, LANES)


def _agg_vmem_limit(tm, tk, n_pad):
    a_bytes = 2 * tm * tk                    # int8 A tiles, double-buffered
    msg_bytes = 2 * n_pad * LANES * 2        # resident bf16 msg (+ buffer slack)
    acc_bytes = tm * LANES * 4               # f32 accumulator scratch
    out_bytes = 2 * tm * LANES * 4           # f32 output tiles, double-buffered
    misc = 2 * tm * LANES * 4 // 8 + (1 << 20)   # lane-padded dinv, bias, slack
    need = a_bytes + msg_bytes + acc_bytes + out_bytes + misc
    return int(min(max(2 * need, 16 << 20), 48 << 20))


def _score_vmem_limit(n_pad, te):
    need = 2 * n_pad * LANES * 4 + 2 * te * LANES * 4 + (1 << 20)
    return int(min(max(2 * need, 16 << 20), 48 << 20))


# ----------------------------------------------------------------------------
# Kernels
# ----------------------------------------------------------------------------
def _transform_kernel(h_ref, w_ref, dinv_ref, msg_ref):
    """msg = D^{-1/2} * (h @ W), cast to bf16 for the aggregation stream."""
    hw = jnp.dot(h_ref[...].astype(jnp.bfloat16),
                 w_ref[...].astype(jnp.bfloat16),
                 preferred_element_type=jnp.float32)
    msg_ref[...] = (dinv_ref[...] * hw).astype(jnp.bfloat16)


def _aggregate_kernel(a_ref, msg_ref, dinv_ref, b_ref, out_ref, acc_ref,
                      *, tk, apply_relu):
    """out = [relu]( D^{-1/2} * (A @ msg) + b ), tiled over (row, K) grid."""
    k = pl.program_id(1)

    @pl.when(k == 0)
    def _():
        acc_ref[...] = jnp.zeros_like(acc_ref)

    # int8 -> bf16 upcast of the streamed A tile (via f32 for a safe convert
    # chain); entries are small exact integers so this is lossless.
    a_tile = a_ref[...].astype(jnp.float32).astype(jnp.bfloat16)

    start = pl.multiple_of(k * tk, tk)
    m = msg_ref[pl.ds(start, tk), :]                       # resident bf16 msg
    acc_ref[...] += jnp.dot(a_tile, m, preferred_element_type=jnp.float32)

    @pl.when(k == pl.num_programs(1) - 1)
    def _():
        h = dinv_ref[...] * acc_ref[...] + b_ref[...]
        if apply_relu:
            h = jnp.maximum(h, 0.0)
        out_ref[...] = h


def _score_kernel(src_ref, dst_ref, h_ref, o_ref, hs_ref, hd_ref, *, te):
    """score[e] = <h[src[e]], h[dst[e]]> for one tile of `te` edges."""
    base = pl.program_id(0) * te

    def gather(e, carry):
        s = src_ref[base + e]
        d = dst_ref[base + e]
        hs_ref[pl.ds(e, 1), :] = h_ref[pl.ds(s, 1), :]
        hd_ref[pl.ds(e, 1), :] = h_ref[pl.ds(d, 1), :]
        return carry

    lax.fori_loop(0, te, gather, 0)

    prod = hs_ref[...] * hd_ref[...]                        # (te, 128) f32
    ones = jnp.ones((1, prod.shape[1]), jnp.float32)
    # Contract the feature axis with a ones vector -> edges land on the lane
    # axis, giving a lane-dense (1, te) unmasked store.
    o_ref[...] = lax.dot_general(ones, prod, (((1,), (1,)), ((), ())),
                                 preferred_element_type=jnp.float32)


# ----------------------------------------------------------------------------
# pallas_call wrappers
# ----------------------------------------------------------------------------
def _transform(h, w, dinv, tm):
    n_pad, f_in = h.shape
    return pl.pallas_call(
        _transform_kernel,
        out_shape=jax.ShapeDtypeStruct((n_pad, LANES), jnp.bfloat16),
        grid_spec=pltpu.PrefetchScalarGridSpec(
            num_scalar_prefetch=0,
            grid=(n_pad // tm,),
            in_specs=[pl.BlockSpec((tm, f_in), lambda i: (i, 0)),
                      pl.BlockSpec((f_in, LANES), lambda i: (0, 0)),
                      pl.BlockSpec((tm, 1), lambda i: (i, 0))],
            out_specs=pl.BlockSpec((tm, LANES), lambda i: (i, 0)),
        ),
        compiler_params=pltpu.CompilerParams(
            dimension_semantics=("parallel",)),
    )(h, w, dinv)


def _aggregate(adj_i8, msg, dinv, b, tm, tk, apply_relu):
    n_pad = adj_i8.shape[0]
    kernel = functools.partial(_aggregate_kernel, tk=tk, apply_relu=apply_relu)
    cost = pl.CostEstimate(
        flops=2 * n_pad * n_pad * LANES,
        transcendentals=0,
        bytes_accessed=(n_pad * n_pad            # int8 adjacency
                        + n_pad * LANES * 2      # bf16 msg
                        + n_pad * LANES * 4      # f32 output
                        + n_pad * 4))            # dinv
    return pl.pallas_call(
        kernel,
        out_shape=jax.ShapeDtypeStruct((n_pad, LANES), jnp.float32),
        grid_spec=pltpu.PrefetchScalarGridSpec(
            num_scalar_prefetch=0,
            grid=(n_pad // tm, n_pad // tk),
            in_specs=[
                # streamed int8 adjacency tiles (sweep pl.Buffered(3) here if
                # the A DMA is still exposed, most likely on v7x)
                pl.BlockSpec((tm, tk), lambda i, k: (i, k)),
                # msg stays untiled & VMEM-resident across the whole grid
                pl.BlockSpec((n_pad, LANES), lambda i, k: (0, 0)),
                # per-row-tile D^{-1/2} slice
                pl.BlockSpec((tm, 1), lambda i, k: (i, 0)),
                pl.BlockSpec((1, LANES), lambda i, k: (0, 0)),
            ],
            out_specs=pl.BlockSpec((tm, LANES), lambda i, k: (i, 0)),
            scratch_shapes=[pltpu.VMEM((tm, LANES), jnp.float32)],
        ),
        compiler_params=pltpu.CompilerParams(
            dimension_semantics=("parallel", "arbitrary"),
            vmem_limit_bytes=_agg_vmem_limit(tm, tk, n_pad)),
        cost_estimate=cost,
    )(adj_i8, msg, dinv, b)


def _score(h, src_ids, dst_ids, te=EDGE_TILE):
    n_pad = h.shape[0]
    e_pad = src_ids.shape[0]
    kernel = functools.partial(_score_kernel, te=te)
    return pl.pallas_call(
        kernel,
        out_shape=jax.ShapeDtypeStruct((1, e_pad), jnp.float32),
        grid_spec=pltpu.PrefetchScalarGridSpec(
            num_scalar_prefetch=2,                 # src, dst ids -> SMEM
            grid=(e_pad // te,),
            in_specs=[pl.BlockSpec((n_pad, LANES), lambda i, s, d: (0, 0))],
            out_specs=pl.BlockSpec((1, te), lambda i, s, d: (0, i)),
            scratch_shapes=[pltpu.VMEM((te, LANES), jnp.float32),
                            pltpu.VMEM((te, LANES), jnp.float32)],
        ),
        compiler_params=pltpu.CompilerParams(
            dimension_semantics=("arbitrary",),
            vmem_limit_bytes=_score_vmem_limit(n_pad, te)),
    )(src_ids, dst_ids, h)


# ----------------------------------------------------------------------------
# Graph preprocessing (built once per graph; reused across forward calls)
# ----------------------------------------------------------------------------
def build_graph(edge_index, num_nodes):
    src = jnp.asarray(edge_index[0], jnp.int32)
    dst = jnp.asarray(edge_index[1], jnp.int32)
    num_edges = int(src.shape[0])

    n_pad = _round_up(max(num_nodes, 8), LANES)
    e_pad = _round_up(max(num_edges, 1), EDGE_TILE)

    # A^T orientation (row = target node) + self loops, built directly in the
    # int8 streaming dtype (entries are small exact integers).  NOTE: duplicate
    # edges / pre-existing self edges are double-counted, matching the
    # reference (not torch_geometric's coalesce behaviour).
    adj = jnp.zeros((n_pad, n_pad), jnp.int8)
    adj = adj.at[dst, src].add(jnp.ones_like(dst, jnp.int8))
    diag = jnp.arange(num_nodes)
    adj = adj.at[diag, diag].add(jnp.ones((num_nodes,), jnp.int8))

    # Degrees straight from the edge list (O(E+N)); D^{-1/2} applied in-kernel.
    deg = jnp.zeros((n_pad,), jnp.float32).at[dst].add(1.0)
    deg = deg + (jnp.arange(n_pad) < num_nodes).astype(jnp.float32)
    dinv = jnp.where(deg > 0, lax.rsqrt(deg), 0.0).reshape(n_pad, 1)

    # Padded edge lanes alias node 0 and produce garbage scores; callers must
    # only consume the first `num_edges` scores (the wrapper slices them off).
    src_pad = jnp.zeros((e_pad,), jnp.int32).at[:num_edges].set(src)
    dst_pad = jnp.zeros((e_pad,), jnp.int32).at[:num_edges].set(dst)

    return dict(adj=adj, dinv=dinv, src=src_pad, dst=dst_pad,
                num_nodes=num_nodes, num_edges=num_edges)


# ----------------------------------------------------------------------------
# Forward pass
# ----------------------------------------------------------------------------
@jax.jit
def _forward_padded(x, adj_i8, dinv, src_ids, dst_ids,
                    w1, b1, w2, b2, w3, b3):
    n_pad = adj_i8.shape[0]
    num_nodes, f_in = x.shape
    tm = _pick_tile(n_pad, 256)    # row tile: fills the 256-row MXU side
    tk = _pick_tile(n_pad, 1024)   # K tile: big enough to hit ~85% HBM roofline

    def pad_w(w):
        out = jnp.zeros((LANES if w.shape[0] > FIN_PAD else FIN_PAD, LANES),
                        jnp.float32)
        return out.at[:w.shape[0], :w.shape[1]].set(w)

    def pad_b(b):
        return jnp.zeros((1, LANES), jnp.float32).at[0, :b.shape[0]].set(b)

    x_pad = jnp.zeros((n_pad, FIN_PAD), jnp.float32).at[:num_nodes, :f_in].set(x)
    w1p, b1p = pad_w(w1), pad_b(b1)
    w2p, b2p = pad_w(w2), pad_b(b2)
    w3p, b3p = pad_w(w3), pad_b(b3)

    msg = _transform(x_pad, w1p, dinv, tm)
    h = _aggregate(adj_i8, msg, dinv, b1p, tm, tk, apply_relu=True)
    msg = _transform(h, w2p, dinv, tm)
    h = _aggregate(adj_i8, msg, dinv, b2p, tm, tk, apply_relu=True)
    msg = _transform(h, w3p, dinv, tm)
    h = _aggregate(adj_i8, msg, dinv, b3p, tm, tk, apply_relu=False)

    return _score(h, src_ids, dst_ids)          # (1, e_pad), lane-dense


def track_gnn_forward(x, graph, params):
    scores = _forward_padded(
        x.astype(jnp.float32), graph["adj"], graph["dinv"],
        graph["src"], graph["dst"],
        params["w1"], params["b1"], params["w2"], params["b2"],
        params["w3"], params["b3"])
    return scores[0, :graph["num_edges"]]


# ----------------------------------------------------------------------------
# Init + reference
# ----------------------------------------------------------------------------
def init_params(key):
    """Deterministic glorot-uniform weights, zero biases (PyG GCNConv init)."""
    def glorot(k, shape):
        lim = (6.0 / (shape[0] + shape[1])) ** 0.5
        return jax.random.uniform(k, shape, jnp.float32, -lim, lim)
    k1, k2, k3 = jax.random.split(key, 3)
    return {
        "w1": glorot(k1, (3, 64)),  "b1": jnp.zeros((64,), jnp.float32),
        "w2": glorot(k2, (64, 32)), "b2": jnp.zeros((32,), jnp.float32),
        "w3": glorot(k3, (32, 16)), "b3": jnp.zeros((16,), jnp.float32),
    }


def track_gnn_reference(x, edge_index, params):
    """Pure-JAX f32 reference mirroring torch_geometric GCNConv + dot scoring."""
    N = x.shape[0]
    src, dst = edge_index[0], edge_index[1]
    adj = jnp.zeros((N, N), jnp.float32).at[dst, src].add(1.0) + jnp.eye(N)
    deg = jnp.sum(adj, axis=1)
    dinv = jnp.where(deg > 0, lax.rsqrt(deg), 0.0)
    a_hat = dinv[:, None] * adj * dinv[None, :]

    h = jax.nn.relu(a_hat @ (x @ params["w1"]) + params["b1"])
    h = jax.nn.relu(a_hat @ (h @ params["w2"]) + params["b2"])
    h = a_hat @ (h @ params["w3"]) + params["b3"]
    return jnp.sum(h[src] * h[dst], axis=1)


if __name__ == "__main__":
    key = jax.random.PRNGKey(0)
    k_x, k_e, k_p = jax.random.split(key, 3)

    N, F_IN, E = 16, 3, 32
    x = jax.random.normal(k_x, (N, F_IN), dtype=jnp.float32)
    edge_index = jax.random.randint(k_e, (2, E), 0, N, dtype=jnp.int32)
    params = init_params(k_p)

    graph = build_graph(edge_index, N)     # built once; reusable across calls
    score = jax.block_until_ready(track_gnn_forward(x, graph, params))
    ref = track_gnn_reference(x, edge_index, params)

    assert score.shape == (E,)
    assert bool(jnp.all(jnp.isfinite(score)))
    # bf16 adjacency/msg/transform operands on the MXU => slightly looser tol
    assert bool(jnp.allclose(score, ref, atol=3e-2, rtol=3e-2))
    print("KERNEL_OK")
</pallas_src>

<mosaic_0001>
module attributes {stable_mosaic.version = 11 : i64} {
  func.func @_transform_kernel(%arg0: i32, %arg1: memref<128x8xf32, #tpu.memory_space<vmem>>, %arg2: memref<8x128xf32, #tpu.memory_space<vmem>>, %arg3: memref<128x1xf32, #tpu.memory_space<vmem>>, %arg4: memref<128x128xbf16, #tpu.memory_space<vmem>>) attributes {dimension_semantics = [#tpu.dimension_semantics<parallel>], iteration_bounds = array<i64: 1>, scalar_prefetch = 0 : i64, scratch_operands = 0 : i64, tpu.core_type = #tpu.core_type<tc>, window_params = [{transform_indices = @transform_0, window_bounds = array<i64: 128, 8>}, {pipeline_mode = #tpu.pipeline_mode<synchronous>, transform_indices = @transform_1, window_bounds = array<i64: 8, 128>}, {transform_indices = @transform_2, window_bounds = array<i64: 128, 1>}, {transform_indices = @transform_3, window_bounds = array<i64: 128, 128>}]} {
    %c0 = arith.constant 0 : index
    %c0_0 = arith.constant 0 : index
    %0 = vector.load %arg1[%c0, %c0_0] : memref<128x8xf32, #tpu.memory_space<vmem>>, vector<128x8xf32>
    %1 = arith.truncf %0 : vector<128x8xf32> to vector<128x8xbf16>
    %c0_1 = arith.constant 0 : index
    %c0_2 = arith.constant 0 : index
    %2 = vector.load %arg2[%c0_1, %c0_2] : memref<8x128xf32, #tpu.memory_space<vmem>>, vector<8x128xf32>
    %3 = arith.truncf %2 : vector<8x128xf32> to vector<8x128xbf16>
    %cst = arith.constant dense<0.000000e+00> : vector<128x128xf32>
    %4 = tpu.matmul %1, %3, %cst {dimension_numbers = #tpu.dot_dimension_numbers<[1], [0], [0], [1], [0, 0, 1, 1], [], []>} : vector<128x8xbf16>, vector<8x128xbf16>, vector<128x128xf32> -> vector<128x128xf32>
    %c0_3 = arith.constant 0 : index
    %c0_4 = arith.constant 0 : index
    %5 = vector.load %arg3[%c0_3, %c0_4] : memref<128x1xf32, #tpu.memory_space<vmem>>, vector<128x1xf32>
    %6 = vector.broadcast %5 : vector<128x1xf32> to vector<128x128xf32>
    %7 = arith.mulf %6, %4 : vector<128x128xf32>
    %8 = arith.truncf %7 : vector<128x128xf32> to vector<128x128xbf16>
    %c0_5 = arith.constant 0 : index
    %c0_6 = arith.constant 0 : index
    %9 = vector.load %arg4[%c0_5, %c0_6] : memref<128x128xbf16, #tpu.memory_space<vmem>>, vector<128x128xbf16>
    tpu.vector_store %arg4[%c0_5, %c0_6], %8 {strides = array<i32>} : memref<128x128xbf16, #tpu.memory_space<vmem>>, vector<128x128xbf16>,
    return
  }
  func.func @transform_0(%arg0: i32) -> (i32, i32) {
    %c0_i32 = arith.constant 0 : i32
    %c0_i32_0 = arith.constant 0 : i32
    return %arg0, %c0_i32 : i32, i32
  }
  func.func @transform_1(%arg0: i32) -> (i32, i32) {
    %c0_i32 = arith.constant 0 : i32
    %c0_i32_0 = arith.constant 0 : i32
    %c0_i32_1 = arith.constant 0 : i32
    return %c0_i32, %c0_i32_0 : i32, i32
  }
  func.func @transform_2(%arg0: i32) -> (i32, i32) {
    %c0_i32 = arith.constant 0 : i32
    %c0_i32_0 = arith.constant 0 : i32
    return %arg0, %c0_i32 : i32, i32
  }
  func.func @transform_3(%arg0: i32) -> (i32, i32) {
    %c0_i32 = arith.constant 0 : i32
    %c0_i32_0 = arith.constant 0 : i32
    return %arg0, %c0_i32 : i32, i32
  }
}

module attributes {stable_mosaic.version = 11 : i64} {
  func.func @_aggregate_kernel(%arg0: i32, %arg1: i32, %arg2: memref<128x128xi8, #tpu.memory_space<vmem>>, %arg3: memref<128x128xbf16, #tpu.memory_space<vmem>>, %arg4: memref<128x1xf32, #tpu.memory_space<vmem>>, %arg5: memref<1x128xf32, #tpu.memory_space<vmem>>, %arg6: memref<128x128xf32, #tpu.memory_space<vmem>>, %arg7: memref<128x128xf32, #tpu.memory_space<vmem>>) attributes {dimension_semantics = [#tpu.dimension_semantics<parallel>, #tpu.dimension_semantics<arbitrary>], iteration_bounds = array<i64: 1, 1>, scalar_prefetch = 0 : i64, scratch_operands = 1 : i64, tpu.core_type = #tpu.core_type<tc>, window_params = [{transform_indices = @transform_0, window_bounds = array<i64: 128, 128>}, {pipeline_mode = #tpu.pipeline_mode<synchronous>, transform_indices = @transform_1, window_bounds = array<i64: 128, 128>}, {transform_indices = @transform_2, window_bounds = array<i64: 128, 1>}, {pipeline_mode = #tpu.pipeline_mode<synchronous>, transform_indices = @transform_3, window_bounds = array<i64: 1, 128>}, {transform_indices = @transform_4, window_bounds = array<i64: 128, 128>}]} {
    %c0_i32 = arith.constant 0 : i32
    %0 = arith.cmpi eq, %arg1, %c0_i32 : i32
    %1 = arith.extui %0 : i1 to i32
    %c0_i32_0 = arith.constant 0 : i32
    %2 = arith.cmpi ne, %1, %c0_i32_0 : i32
    scf.if %2 {
      %cst_9 = arith.constant 0.000000e+00 : f32
      %17 = vector.broadcast %cst_9 : f32 to vector<128x128xf32>
      %c0_10 = arith.constant 0 : index
      %c0_11 = arith.constant 0 : index
      %18 = vector.load %arg7[%c0_10, %c0_11] : memref<128x128xf32, #tpu.memory_space<vmem>>, vector<128x128xf32>
      tpu.vector_store %arg7[%c0_10, %c0_11], %17 {strides = array<i32>} : memref<128x128xf32, #tpu.memory_space<vmem>>, vector<128x128xf32>,
    } else {
    }
    %c0 = arith.constant 0 : index
    %c0_1 = arith.constant 0 : index
    %3 = vector.load %arg2[%c0, %c0_1] : memref<128x128xi8, #tpu.memory_space<vmem>>, vector<128x128xi8>
    %4 = arith.sitofp %3 : vector<128x128xi8> to vector<128x128xf32>
    %5 = arith.truncf %4 : vector<128x128xf32> to vector<128x128xbf16>
    %c128_i32 = arith.constant 128 : i32
    %6 = arith.muli %arg1, %c128_i32 : i32
    %7 = tpu.assume_multiple %6, 128 : i32
    %8 = arith.index_cast %7 : i32 to index
    %c0_2 = arith.constant 0 : index
    %9 = vector.load %arg3[%8, %c0_2] : memref<128x128xbf16, #tpu.memory_space<vmem>>, vector<128x128xbf16>
    %c0_3 = arith.constant 0 : index
    %c0_4 = arith.constant 0 : index
    %10 = vector.load %arg7[%c0_3, %c0_4] : memref<128x128xf32, #tpu.memory_space<vmem>>, vector<128x128xf32>
    %cst = arith.constant dense<0.000000e+00> : vector<128x128xf32>
    %11 = tpu.matmul %5, %9, %cst {dimension_numbers = #tpu.dot_dimension_numbers<[1], [0], [0], [1], [0, 0, 1, 1], [], []>} : vector<128x128xbf16>, vector<128x128xbf16>, vector<128x128xf32> -> vector<128x128xf32>
    %12 = arith.addf %10, %11 : vector<128x128xf32>
    %c0_5 = arith.constant 0 : index
    %c0_6 = arith.constant 0 : index
    %13 = vector.load %arg7[%c0_5, %c0_6] : memref<128x128xf32, #tpu.memory_space<vmem>>, vector<128x128xf32>
    tpu.vector_store %arg7[%c0_5, %c0_6], %12 {strides = array<i32>} : memref<128x128xf32, #tpu.memory_space<vmem>>, vector<128x128xf32>,
    %c0_i32_7 = arith.constant 0 : i32
    %14 = arith.cmpi eq, %arg1, %c0_i32_7 : i32
    %15 = arith.extui %14 : i1 to i32
    %c0_i32_8 = arith.constant 0 : i32
    %16 = arith.cmpi ne, %15, %c0_i32_8 : i32
    scf.if %16 {
      %c0_9 = arith.constant 0 : index
      %c0_10 = arith.constant 0 : index
      %17 = vector.load %arg4[%c0_9, %c0_10] : memref<128x1xf32, #tpu.memory_space<vmem>>, vector<128x1xf32>
      %c0_11 = arith.constant 0 : index
      %c0_12 = arith.constant 0 : index
      %18 = vector.load %arg7[%c0_11, %c0_12] : memref<128x128xf32, #tpu.memory_space<vmem>>, vector<128x128xf32>
      %19 = vector.broadcast %17 : vector<128x1xf32> to vector<128x128xf32>
      %20 = arith.mulf %19, %18 : vector<128x128xf32>
      %c0_13 = arith.constant 0 : index
      %c0_14 = arith.constant 0 : index
      %21 = vector.load %arg5[%c0_13, %c0_14] : memref<1x128xf32, #tpu.memory_space<vmem>>, vector<1x128xf32>
      %22 = vector.broadcast %21 : vector<1x128xf32> to vector<128x128xf32>
      %23 = arith.addf %20, %22 : vector<128x128xf32>
      %cst_15 = arith.constant 0.000000e+00 : f32
      %24 = vector.broadcast %cst_15 : f32 to vector<128x128xf32>
      %25 = arith.maximumf %23, %24 : vector<128x128xf32>
      %c0_16 = arith.constant 0 : index
      %c0_17 = arith.constant 0 : index
      %26 = vector.load %arg6[%c0_16, %c0_17] : memref<128x128xf32, #tpu.memory_space<vmem>>, vector<128x128xf32>
      tpu.vector_store %arg6[%c0_16, %c0_17], %25 {strides = array<i32>} : memref<128x128xf32, #tpu.memory_space<vmem>>, vector<128x128xf32>,
    } else {
    }
    return
  }
  func.func @transform_0(%arg0: i32, %arg1: i32) -> (i32, i32) {
    %c0_i32 = arith.constant 0 : i32
    return %arg0, %arg1 : i32, i32
  }
  func.func @transform_1(%arg0: i32, %arg1: i32) -> (i32, i32) {
    %c0_i32 = arith.constant 0 : i32
    %c0_i32_0 = arith.constant 0 : i32
    %c0_i32_1 = arith.constant 0 : i32
    return %c0_i32, %c0_i32_0 : i32, i32
  }
  func.func @transform_2(%arg0: i32, %arg1: i32) -> (i32, i32) {
    %c0_i32 = arith.constant 0 : i32
    %c0_i32_0 = arith.constant 0 : i32
    return %arg0, %c0_i32 : i32, i32
  }
  func.func @transform_3(%arg0: i32, %arg1: i32) -> (i32, i32) {
    %c0_i32 = arith.constant 0 : i32
    %c0_i32_0 = arith.constant 0 : i32
    %c0_i32_1 = arith.constant 0 : i32
    return %c0_i32, %c0_i32_0 : i32, i32
  }
  func.func @transform_4(%arg0: i32, %arg1: i32) -> (i32, i32) {
    %c0_i32 = arith.constant 0 : i32
    %c0_i32_0 = arith.constant 0 : i32
    return %arg0, %c0_i32 : i32, i32
  }
}

module attributes {stable_mosaic.version = 11 : i64} {
  func.func @_transform_kernel(%arg0: i32, %arg1: memref<128x128xf32, #tpu.memory_space<vmem>>, %arg2: memref<128x128xf32, #tpu.memory_space<vmem>>, %arg3: memref<128x1xf32, #tpu.memory_space<vmem>>, %arg4: memref<128x128xbf16, #tpu.memory_space<vmem>>) attributes {dimension_semantics = [#tpu.dimension_semantics<parallel>], iteration_bounds = array<i64: 1>, scalar_prefetch = 0 : i64, scratch_operands = 0 : i64, tpu.core_type = #tpu.core_type<tc>, window_params = [{transform_indices = @transform_0, window_bounds = array<i64: 128, 128>}, {pipeline_mode = #tpu.pipeline_mode<synchronous>, transform_indices = @transform_1, window_bounds = array<i64: 128, 128>}, {transform_indices = @transform_2, window_bounds = array<i64: 128, 1>}, {transform_indices = @transform_3, window_bounds = array<i64: 128, 128>}]} {
    %c0 = arith.constant 0 : index
    %c0_0 = arith.constant 0 : index
    %0 = vector.load %arg1[%c0, %c0_0] : memref<128x128xf32, #tpu.memory_space<vmem>>, vector<128x128xf32>
    %1 = arith.truncf %0 : vector<128x128xf32> to vector<128x128xbf16>
    %c0_1 = arith.constant 0 : index
    %c0_2 = arith.constant 0 : index
    %2 = vector.load %arg2[%c0_1, %c0_2] : memref<128x128xf32, #tpu.memory_space<vmem>>, vector<128x128xf32>
    %3 = arith.truncf %2 : vector<128x128xf32> to vector<128x128xbf16>
    %cst = arith.constant dense<0.000000e+00> : vector<128x128xf32>
    %4 = tpu.matmul %1, %3, %cst {dimension_numbers = #tpu.dot_dimension_numbers<[1], [0], [0], [1], [0, 0, 1, 1], [], []>} : vector<128x128xbf16>, vector<128x128xbf16>, vector<128x128xf32> -> vector<128x128xf32>
    %c0_3 = arith.constant 0 : index
    %c0_4 = arith.constant 0 : index
    %5 = vector.load %arg3[%c0_3, %c0_4] : memref<128x1xf32, #tpu.memory_space<vmem>>, vector<128x1xf32>
    %6 = vector.broadcast %5 : vector<128x1xf32> to vector<128x128xf32>
    %7 = arith.mulf %6, %4 : vector<128x128xf32>
    %8 = arith.truncf %7 : vector<128x128xf32> to vector<128x128xbf16>
    %c0_5 = arith.constant 0 : index
    %c0_6 = arith.constant 0 : index
    %9 = vector.load %arg4[%c0_5, %c0_6] : memref<128x128xbf16, #tpu.memory_space<vmem>>, vector<128x128xbf16>
    tpu.vector_store %arg4[%c0_5, %c0_6], %8 {strides = array<i32>} : memref<128x128xbf16, #tpu.memory_space<vmem>>, vector<128x128xbf16>,
    return
  }
  func.func @transform_0(%arg0: i32) -> (i32, i32) {
    %c0_i32 = arith.constant 0 : i32
    %c0_i32_0 = arith.constant 0 : i32
    return %arg0, %c0_i32 : i32, i32
  }
  func.func @transform_1(%arg0: i32) -> (i32, i32) {
    %c0_i32 = arith.constant 0 : i32
    %c0_i32_0 = arith.constant 0 : i32
    %c0_i32_1 = arith.constant 0 : i32
    return %c0_i32, %c0_i32_0 : i32, i32
  }
  func.func @transform_2(%arg0: i32) -> (i32, i32) {
    %c0_i32 = arith.constant 0 : i32
    %c0_i32_0 = arith.constant 0 : i32
    return %arg0, %c0_i32 : i32, i32
  }
  func.func @transform_3(%arg0: i32) -> (i32, i32) {
    %c0_i32 = arith.constant 0 : i32
    %c0_i32_0 = arith.constant 0 : i32
    return %arg0, %c0_i32 : i32, i32
  }
}

module attributes {stable_mosaic.version = 11 : i64} {
  func.func @_aggregate_kernel(%arg0: i32, %arg1: i32, %arg2: memref<128x128xi8, #tpu.memory_space<vmem>>, %arg3: memref<128x128xbf16, #tpu.memory_space<vmem>>, %arg4: memref<128x1xf32, #tpu.memory_space<vmem>>, %arg5: memref<1x128xf32, #tpu.memory_space<vmem>>, %arg6: memref<128x128xf32, #tpu.memory_space<vmem>>, %arg7: memref<128x128xf32, #tpu.memory_space<vmem>>) attributes {dimension_semantics = [#tpu.dimension_semantics<parallel>, #tpu.dimension_semantics<arbitrary>], iteration_bounds = array<i64: 1, 1>, scalar_prefetch = 0 : i64, scratch_operands = 1 : i64, tpu.core_type = #tpu.core_type<tc>, window_params = [{transform_indices = @transform_0, window_bounds = array<i64: 128, 128>}, {pipeline_mode = #tpu.pipeline_mode<synchronous>, transform_indices = @transform_1, window_bounds = array<i64: 128, 128>}, {transform_indices = @transform_2, window_bounds = array<i64: 128, 1>}, {pipeline_mode = #tpu.pipeline_mode<synchronous>, transform_indices = @transform_3, window_bounds = array<i64: 1, 128>}, {transform_indices = @transform_4, window_bounds = array<i64: 128, 128>}]} {
    %c0_i32 = arith.constant 0 : i32
    %0 = arith.cmpi eq, %arg1, %c0_i32 : i32
    %1 = arith.extui %0 : i1 to i32
    %c0_i32_0 = arith.constant 0 : i32
    %2 = arith.cmpi ne, %1, %c0_i32_0 : i32
    scf.if %2 {
      %cst_9 = arith.constant 0.000000e+00 : f32
      %17 = vector.broadcast %cst_9 : f32 to vector<128x128xf32>
      %c0_10 = arith.constant 0 : index
      %c0_11 = arith.constant 0 : index
      %18 = vector.load %arg7[%c0_10, %c0_11] : memref<128x128xf32, #tpu.memory_space<vmem>>, vector<128x128xf32>
      tpu.vector_store %arg7[%c0_10, %c0_11], %17 {strides = array<i32>} : memref<128x128xf32, #tpu.memory_space<vmem>>, vector<128x128xf32>,
    } else {
    }
    %c0 = arith.constant 0 : index
    %c0_1 = arith.constant 0 : index
    %3 = vector.load %arg2[%c0, %c0_1] : memref<128x128xi8, #tpu.memory_space<vmem>>, vector<128x128xi8>
    %4 = arith.sitofp %3 : vector<128x128xi8> to vector<128x128xf32>
    %5 = arith.truncf %4 : vector<128x128xf32> to vector<128x128xbf16>
    %c128_i32 = arith.constant 128 : i32
    %6 = arith.muli %arg1, %c128_i32 : i32
    %7 = tpu.assume_multiple %6, 128 : i32
    %8 = arith.index_cast %7 : i32 to index
    %c0_2 = arith.constant 0 : index
    %9 = vector.load %arg3[%8, %c0_2] : memref<128x128xbf16, #tpu.memory_space<vmem>>, vector<128x128xbf16>
    %c0_3 = arith.constant 0 : index
    %c0_4 = arith.constant 0 : index
    %10 = vector.load %arg7[%c0_3, %c0_4] : memref<128x128xf32, #tpu.memory_space<vmem>>, vector<128x128xf32>
    %cst = arith.constant dense<0.000000e+00> : vector<128x128xf32>
    %11 = tpu.matmul %5, %9, %cst {dimension_numbers = #tpu.dot_dimension_numbers<[1], [0], [0], [1], [0, 0, 1, 1], [], []>} : vector<128x128xbf16>, vector<128x128xbf16>, vector<128x128xf32> -> vector<128x128xf32>
    %12 = arith.addf %10, %11 : vector<128x128xf32>
    %c0_5 = arith.constant 0 : index
    %c0_6 = arith.constant 0 : index
    %13 = vector.load %arg7[%c0_5, %c0_6] : memref<128x128xf32, #tpu.memory_space<vmem>>, vector<128x128xf32>
    tpu.vector_store %arg7[%c0_5, %c0_6], %12 {strides = array<i32>} : memref<128x128xf32, #tpu.memory_space<vmem>>, vector<128x128xf32>,
    %c0_i32_7 = arith.constant 0 : i32
    %14 = arith.cmpi eq, %arg1, %c0_i32_7 : i32
    %15 = arith.extui %14 : i1 to i32
    %c0_i32_8 = arith.constant 0 : i32
    %16 = arith.cmpi ne, %15, %c0_i32_8 : i32
    scf.if %16 {
      %c0_9 = arith.constant 0 : index
      %c0_10 = arith.constant 0 : index
      %17 = vector.load %arg4[%c0_9, %c0_10] : memref<128x1xf32, #tpu.memory_space<vmem>>, vector<128x1xf32>
      %c0_11 = arith.constant 0 : index
      %c0_12 = arith.constant 0 : index
      %18 = vector.load %arg7[%c0_11, %c0_12] : memref<128x128xf32, #tpu.memory_space<vmem>>, vector<128x128xf32>
      %19 = vector.broadcast %17 : vector<128x1xf32> to vector<128x128xf32>
      %20 = arith.mulf %19, %18 : vector<128x128xf32>
      %c0_13 = arith.constant 0 : index
      %c0_14 = arith.constant 0 : index
      %21 = vector.load %arg5[%c0_13, %c0_14] : memref<1x128xf32, #tpu.memory_space<vmem>>, vector<1x128xf32>
      %22 = vector.broadcast %21 : vector<1x128xf32> to vector<128x128xf32>
      %23 = arith.addf %20, %22 : vector<128x128xf32>
      %c0_15 = arith.constant 0 : index
      %c0_16 = arith.constant 0 : index
      %24 = vector.load %arg6[%c0_15, %c0_16] : memref<128x128xf32, #tpu.memory_space<vmem>>, vector<128x128xf32>
      tpu.vector_store %arg6[%c0_15, %c0_16], %23 {strides = array<i32>} : memref<128x128xf32, #tpu.memory_space<vmem>>, vector<128x128xf32>,
    } else {
    }
    return
  }
  func.func @transform_0(%arg0: i32, %arg1: i32) -> (i32, i32) {
    %c0_i32 = arith.constant 0 : i32
    return %arg0, %arg1 : i32, i32
  }
  func.func @transform_1(%arg0: i32, %arg1: i32) -> (i32, i32) {
    %c0_i32 = arith.constant 0 : i32
    %c0_i32_0 = arith.constant 0 : i32
    %c0_i32_1 = arith.constant 0 : i32
    return %c0_i32, %c0_i32_0 : i32, i32
  }
  func.func @transform_2(%arg0: i32, %arg1: i32) -> (i32, i32) {
    %c0_i32 = arith.constant 0 : i32
    %c0_i32_0 = arith.constant 0 : i32
    return %arg0, %c0_i32 : i32, i32
  }
  func.func @transform_3(%arg0: i32, %arg1: i32) -> (i32, i32) {
    %c0_i32 = arith.constant 0 : i32
    %c0_i32_0 = arith.constant 0 : i32
    %c0_i32_1 = arith.constant 0 : i32
    return %c0_i32, %c0_i32_0 : i32, i32
  }
  func.func @transform_4(%arg0: i32, %arg1: i32) -> (i32, i32) {
    %c0_i32 = arith.constant 0 : i32
    %c0_i32_0 = arith.constant 0 : i32
    return %arg0, %c0_i32 : i32, i32
  }
}

module attributes {stable_mosaic.version = 11 : i64} {
  func.func @_score_kernel(%arg0: i32, %arg1: memref<128xi32, #tpu.memory_space<smem>>, %arg2: memref<128xi32, #tpu.memory_space<smem>>, %arg3: memref<128x128xf32, #tpu.memory_space<vmem>>, %arg4: memref<1x128xf32, #tpu.memory_space<vmem>>, %arg5: memref<128x128xf32, #tpu.memory_space<vmem>>, %arg6: memref<128x128xf32, #tpu.memory_space<vmem>>) attributes {dimension_semantics = [#tpu.dimension_semantics<arbitrary>], iteration_bounds = array<i64: 1>, scalar_prefetch = 2 : i64, scratch_operands = 2 : i64, tpu.core_type = #tpu.core_type<tc>, window_params = [{pipeline_mode = #tpu.pipeline_mode<synchronous>, transform_indices = @transform_0, window_bounds = array<i64: 128, 128>}, {transform_indices = @transform_1, window_bounds = array<i64: 1, 128>}]} {
    %c128_i32 = arith.constant 128 : i32
    %0 = arith.muli %arg0, %c128_i32 : i32
    %c0_i32 = arith.constant 0 : i32
    %c128_i32_0 = arith.constant 128 : i32
    %1 = arith.addi %c0_i32, %c128_i32_0 : i32
    %c1_i32 = arith.constant 1 : i32
    scf.for %arg7 = %c0_i32 to %1 step %c1_i32  : i32 {
      %8 = arith.addi %0, %arg7 : i32
      %9 = arith.index_cast %8 : i32 to index
      %10 = memref.load %arg1[%9] : memref<128xi32, #tpu.memory_space<smem>>
      %11 = arith.addi %0, %arg7 : i32
      %12 = arith.index_cast %11 : i32 to index
      %13 = memref.load %arg2[%12] : memref<128xi32, #tpu.memory_space<smem>>
      %14 = arith.index_cast %10 : i32 to index
      %c0_8 = arith.constant 0 : index
      %15 = vector.load %arg3[%14, %c0_8] : memref<128x128xf32, #tpu.memory_space<vmem>>, vector<1x128xf32>
      %16 = arith.index_cast %arg7 : i32 to index
      %c0_9 = arith.constant 0 : index
      %17 = vector.load %arg5[%16, %c0_9] : memref<128x128xf32, #tpu.memory_space<vmem>>, vector<1x128xf32>
      tpu.vector_store %arg5[%16, %c0_9], %15 {strides = array<i32>} : memref<128x128xf32, #tpu.memory_space<vmem>>, vector<1x128xf32>,
      %18 = arith.index_cast %13 : i32 to index
      %c0_10 = arith.constant 0 : index
      %19 = vector.load %arg3[%18, %c0_10] : memref<128x128xf32, #tpu.memory_space<vmem>>, vector<1x128xf32>
      %20 = arith.index_cast %arg7 : i32 to index
      %c0_11 = arith.constant 0 : index
      %21 = vector.load %arg6[%20, %c0_11] : memref<128x128xf32, #tpu.memory_space<vmem>>, vector<1x128xf32>
      tpu.vector_store %arg6[%20, %c0_11], %19 {strides = array<i32>} : memref<128x128xf32, #tpu.memory_space<vmem>>, vector<1x128xf32>,
    }
    %c128_i32_1 = arith.constant 128 : i32
    %c0 = arith.constant 0 : index
    %c0_2 = arith.constant 0 : index
    %2 = vector.load %arg5[%c0, %c0_2] : memref<128x128xf32, #tpu.memory_space<vmem>>, vector<128x128xf32>
    %c0_3 = arith.constant 0 : index
    %c0_4 = arith.constant 0 : index
    %3 = vector.load %arg6[%c0_3, %c0_4] : memref<128x128xf32, #tpu.memory_space<vmem>>, vector<128x128xf32>
    %4 = arith.mulf %2, %3 : vector<128x128xf32>
    %cst = arith.constant 1.000000e+00 : f32
    %5 = vector.broadcast %cst : f32 to vector<1x128xf32>
    %cst_5 = arith.constant dense<0.000000e+00> : vector<1x128xf32>
    %6 = tpu.matmul %5, %4, %cst_5 {dimension_numbers = #tpu.dot_dimension_numbers<[1], [1], [0], [0], [0, 0, 1, 0], [], []>} : vector<1x128xf32>, vector<128x128xf32>, vector<1x128xf32> -> vector<1x128xf32>
    %c0_6 = arith.constant 0 : index
    %c0_7 = arith.constant 0 : index
    %7 = vector.load %arg4[%c0_6, %c0_7] : memref<1x128xf32, #tpu.memory_space<vmem>>, vector<1x128xf32>
    tpu.vector_store %arg4[%c0_6, %c0_7], %6 {strides = array<i32>} : memref<1x128xf32, #tpu.memory_space<vmem>>, vector<1x128xf32>,
    return
  }
  func.func @transform_0(%arg0: i32, %arg1: memref<128xi32, #tpu.memory_space<smem>>, %arg2: memref<128xi32, #tpu.memory_space<smem>>) -> (i32, i32) {
    %c0_i32 = arith.constant 0 : i32
    %c0_i32_0 = arith.constant 0 : i32
    %c0_i32_1 = arith.constant 0 : i32
    return %c0_i32, %c0_i32_0 : i32, i32
  }
  func.func @transform_1(%arg0: i32, %arg1: memref<128xi32, #tpu.memory_space<smem>>, %arg2: memref<128xi32, #tpu.memory_space<smem>>) -> (i32, i32) {
    %c0_i32 = arith.constant 0 : i32
    %c0_i32_0 = arith.constant 0 : i32
    return %c0_i32, %arg0 : i32, i32
  }
}

</mosaic_0001>

<llo_original>
// kernel: _forward_padded.7
$region0: #{_forward_padded.7}
  #allocation0 [shape = 'u32[]', space=smem, size = 0x4, offset = 0x4, fixed_abs, tag = 'smem constant byte address 0x4 - core index']
  #allocation1 [shape = 'u32[72,128]{1,0:T(1,128)}', space=vmem, size = 0x9000, scoped, tag = 'internal scratch']
  %s0 = inlined_call_operand.vmem [shape: f32[128,8], index: 0, kind: input, shape index: {}]
  %s1 = inlined_call_operand.vmem [shape: f32[8,128], index: 1, kind: input, shape index: {}]
  %s2 = inlined_call_operand.vmem [shape: f32[128,1], index: 2, kind: input, shape index: {}]
  %s3 = inlined_call_operand.vmem [shape: bf16[128,128], index: 3, kind: output, shape index: {}]
  %s4 = sld [smem:[#allocation0]]
  $region22: #{_forward_padded.7} parent=0
    _
  %s6 = ssub.s32 1, %s4
  %s7 = scalar_select 0, %s6, %s4
  // Predicated region
  $region2: #{_forward_padded.7} parent=0 // pred_check
    _
  $region3: #{_forward_padded.7} parent=0 // pred_check_branch
    %9 = sbr.rel (0) target = $region5
  $region4: #{_forward_padded.7} parent=0 // pred_region
    _
  $region5: #{_forward_padded.7} parent=0 // pred_fallthru
    _
  // Predicated region
  $region6: #{_forward_padded.7} parent=0 // pred_check
    _
  $region7: #{_forward_padded.7} parent=0 // pred_check_branch
    %11 = sbr.rel (0) target = $region9
  $region8: #{_forward_padded.7} parent=0 // pred_region
    _
  $region9: #{_forward_padded.7} parent=0 // pred_fallthru
    _
  // Predicated region
  $region10: #{_forward_padded.7} parent=0 // pred_check
    _
  $region11: #{_forward_padded.7} parent=0 // pred_check_branch
    %13 = sbr.rel (0) target = $region13
  $region12: #{_forward_padded.7} parent=0 // pred_region
    _
  $region13: #{_forward_padded.7} parent=0 // pred_fallthru
    _
  %v15 = vld [vmem:[%s0] sm:$0xff]
  %v16 = vld [vmem:[%s0 + $0x8] sm:$0xff]
  %v17 = vld [vmem:[%s0 + $0x10] sm:$0xff]
  %v18 = vld [vmem:[%s0 + $0x18] sm:$0xff]
  %v19 = vld [vmem:[%s0 + $0x20] sm:$0xff]
  %v20 = vld [vmem:[%s0 + $0x28] sm:$0xff]
  %v21 = vld [vmem:[%s0 + $0x30] sm:$0xff]
  %v22 = vld [vmem:[%s0 + $0x38] sm:$0xff]
  %v23 = vld [vmem:[%s0 + $0x40] sm:$0xff]
  %v24 = vld [vmem:[%s0 + $0x48] sm:$0xff]
  %v25 = vld [vmem:[%s0 + $0x50] sm:$0xff]
  %v26 = vld [vmem:[%s0 + $0x58] sm:$0xff]
  %v27 = vld [vmem:[%s0 + $0x60] sm:$0xff]
  %v28 = vld [vmem:[%s0 + $0x68] sm:$0xff]
  %v29 = vld [vmem:[%s0 + $0x70] sm:$0xff]
  %v30 = vld [vmem:[%s0 + $0x78] sm:$0xff]
  %v31 = vpack.c.bf16 %v16, %v15
  %v32 = vpack.c.bf16 %v18, %v17
  %v33 = vpack.c.bf16 %v20, %v19
  %v34 = vpack.c.bf16 %v22, %v21
  %v35 = vpack.c.bf16 %v24, %v23
  %v36 = vpack.c.bf16 %v26, %v25
  %v37 = vpack.c.bf16 %v28, %v27
  %v38 = vpack.c.bf16 %v30, %v29
  %v39 = vld [vmem:[%s1] sm:$0xff]
  %v40 = vpack.c.bf16 %v39, %v39
  %vm41 = vcmask 64512
  %v43 = vsel %vm41, %v31, 0
  %v46 = vsel %vm41, %v32, 0
  %v49 = vsel %vm41, %v33, 0
  %v52 = vsel %vm41, %v34, 0
  %v55 = vsel %vm41, %v35, 0
  %v58 = vsel %vm41, %v36, 0
  %v61 = vsel %vm41, %v37, 0
  %v64 = vsel %vm41, %v38, 0
  %vm66 = vcmask 1043456
  %v68 = vsel %vm66, %v40, 0
  %70 = vmatpush.bf16.msra.mxu0 0
  %71 = vmatpush.bf16.msra.mxu0 0
  %72 = vmatpush.bf16.msra.mxu0 0
  %73 = vmatpush.bf16.msra.mxu0 0
  %74 = vmatpush.bf16.msra.mxu0 0
  %75 = vmatpush.bf16.msra.mxu0 0
  %76 = vmatpush.bf16.msra.mxu0 0
  %77 = vmatpush.bf16.msra.mxu0 %v68
  %78 = vmatmul.bf16.gmra.mxu0 %v43
  %v79 = vpop.f32.mrf.mxu0
  %v80 = vadd.f32 0.0, %v79
  %v81 = vpop.f32.mrf.mxu0
  %v82 = vadd.f32 0.0, %v81
  %83 = vmatmul.bf16.gmra.mxu0 %v46
  %v84 = vpop.f32.mrf.mxu0
  %v85 = vadd.f32 0.0, %v84
  %v86 = vpop.f32.mrf.mxu0
  %v87 = vadd.f32 0.0, %v86
  %88 = vmatmul.bf16.gmra.mxu0 %v49
  %v89 = vpop.f32.mrf.mxu0
  %v90 = vadd.f32 0.0, %v89
  %v91 = vpop.f32.mrf.mxu0
  %v92 = vadd.f32 0.0, %v91
  %93 = vmatmul.bf16.gmra.mxu0 %v52
  %v94 = vpop.f32.mrf.mxu0
  %v95 = vadd.f32 0.0, %v94
  %v96 = vpop.f32.mrf.mxu0
  %v97 = vadd.f32 0.0, %v96
  %98 = vmatmul.bf16.gmra.mxu0 %v55
  %v99 = vpop.f32.mrf.mxu0
  %v100 = vadd.f32 0.0, %v99
  %v101 = vpop.f32.mrf.mxu0
  %v102 = vadd.f32 0.0, %v101
  %103 = vmatmul.bf16.gmra.mxu0 %v58
  %v104 = vpop.f32.mrf.mxu0
  %v105 = vadd.f32 0.0, %v104
  %v106 = vpop.f32.mrf.mxu0
  %v107 = vadd.f32 0.0, %v106
  %108 = vmatmul.bf16.gmra.mxu0 %v61
  %v109 = vpop.f32.mrf.mxu0
  %v110 = vadd.f32 0.0, %v109
  %v111 = vpop.f32.mrf.mxu0
  %v112 = vadd.f32 0.0, %v111
  %113 = vmatmul.bf16.gmra.mxu0 %v64
  %v114 = vpop.f32.mrf.mxu0
  %v115 = vadd.f32 0.0, %v114
  %v116 = vpop.f32.mrf.mxu0
  %v117 = vadd.f32 0.0, %v116
  %118 = vdwg.mxu0
  %v119 = vld [vmem:[%s2] sm:$0xff]
  %v120 = vld [vmem:[%s2 + $0x8] sm:$0xff]
  %v121 = vld [vmem:[%s2 + $0x10] sm:$0xff]
  %v122 = vld [vmem:[%s2 + $0x18] sm:$0xff]
  %v123 = vld [vmem:[%s2 + $0x20] sm:$0xff]
  %v124 = vld [vmem:[%s2 + $0x28] sm:$0xff]
  %v125 = vld [vmem:[%s2 + $0x30] sm:$0xff]
  %v126 = vld [vmem:[%s2 + $0x38] sm:$0xff]
  %v127 = vld [vmem:[%s2 + $0x40] sm:$0xff]
  %v128 = vld [vmem:[%s2 + $0x48] sm:$0xff]
  %v129 = vld [vmem:[%s2 + $0x50] sm:$0xff]
  %v130 = vld [vmem:[%s2 + $0x58] sm:$0xff]
  %v131 = vld [vmem:[%s2 + $0x60] sm:$0xff]
  %v132 = vld [vmem:[%s2 + $0x68] sm:$0xff]
  %v133 = vld [vmem:[%s2 + $0x70] sm:$0xff]
  %v134 = vld [vmem:[%s2 + $0x78] sm:$0xff]
  %136 = vset.pattern.permute.xlu0 0
  %137 = vperm.xlu0 %136, %v119
  %v138 = vpop.permute.xlu0 %137
  %141 = vset.pattern.permute.xlu0 0
  %142 = vperm.xlu0 %141, %v120
  %v143 = vpop.permute.xlu0 %142
  %146 = vset.pattern.permute.xlu0 0
  %147 = vperm.xlu0 %146, %v121
  %v148 = vpop.permute.xlu0 %147
  %151 = vset.pattern.permute.xlu0 0
  %152 = vperm.xlu0 %151, %v122
  %v153 = vpop.permute.xlu0 %152
  %156 = vset.pattern.permute.xlu0 0
  %157 = vperm.xlu0 %156, %v123
  %v158 = vpop.permute.xlu0 %157
  %161 = vset.pattern.permute.xlu0 0
  %162 = vperm.xlu0 %161, %v124
  %v163 = vpop.permute.xlu0 %162
  %166 = vset.pattern.permute.xlu0 0
  %167 = vperm.xlu0 %166, %v125
  %v168 = vpop.permute.xlu0 %167
  %171 = vset.pattern.permute.xlu0 0
  %172 = vperm.xlu0 %171, %v126
  %v173 = vpop.permute.xlu0 %172
  %176 = vset.pattern.permute.xlu0 0
  %177 = vperm.xlu0 %176, %v127
  %v178 = vpop.permute.xlu0 %177
  %181 = vset.pattern.permute.xlu0 0
  %182 = vperm.xlu0 %181, %v128
  %v183 = vpop.permute.xlu0 %182
  %186 = vset.pattern.permute.xlu0 0
  %187 = vperm.xlu0 %186, %v129
  %v188 = vpop.permute.xlu0 %187
  %191 = vset.pattern.permute.xlu0 0
  %192 = vperm.xlu0 %191, %v130
  %v193 = vpop.permute.xlu0 %192
  %196 = vset.pattern.permute.xlu0 0
  %197 = vperm.xlu0 %196, %v131
  %v198 = vpop.permute.xlu0 %197
  %201 = vset.pattern.permute.xlu0 0
  %202 = vperm.xlu0 %201, %v132
  %v203 = vpop.permute.xlu0 %202
  %206 = vset.pattern.permute.xlu0 0
  %207 = vperm.xlu0 %206, %v133
  %v208 = vpop.permute.xlu0 %207
  %211 = vset.pattern.permute.xlu0 0
  %212 = vperm.xlu0 %211, %v134
  %v213 = vpop.permute.xlu0 %212
  %v215 = vmul.f32 %v138, %v80
  %v216 = vmul.f32 %v143, %v82
  %v217 = vmul.f32 %v148, %v85
  %v218 = vmul.f32 %v153, %v87
  %v219 = vmul.f32 %v158, %v90
  %v220 = vmul.f32 %v163, %v92
  %v221 = vmul.f32 %v168, %v95
  %v222 = vmul.f32 %v173, %v97
  %v223 = vmul.f32 %v178, %v100
  %v224 = vmul.f32 %v183, %v102
  %v225 = vmul.f32 %v188, %v105
  %v226 = vmul.f32 %v193, %v107
  %v227 = vmul.f32 %v198, %v110
  %v228 = vmul.f32 %v203, %v112
  %v229 = vmul.f32 %v208, %v115
  %v230 = vmul.f32 %v213, %v117
  %v231 = vpack.c.bf16 %v215, %v215
  %v232 = vpack.c.bf16 %v216, %v216
  %v233 = vpack.c.bf16 %v217, %v217
  %v234 = vpack.c.bf16 %v218, %v218
  %v235 = vpack.c.bf16 %v219, %v219
  %v236 = vpack.c.bf16 %v220, %v220
  %v237 = vpack.c.bf16 %v221, %v221
  %v238 = vpack.c.bf16 %v222, %v222
  %v239 = vpack.c.bf16 %v223, %v223
  %v240 = vpack.c.bf16 %v224, %v224
  %v241 = vpack.c.bf16 %v225, %v225
  %v242 = vpack.c.bf16 %v226, %v226
  %v243 = vpack.c.bf16 %v227, %v227
  %v244 = vpack.c.bf16 %v228, %v228
  %v245 = vpack.c.bf16 %v229, %v229
  %v246 = vpack.c.bf16 %v230, %v230
  %247 = vst [vmem:[%s3] sm:$0xf] %v231
  %248 = vst [vmem:[%s3 + $0x4] sm:$0xf] %v232
  %249 = vst [vmem:[%s3 + $0x8] sm:$0xf] %v233
  %250 = vst [vmem:[%s3 + $0xc] sm:$0xf] %v234
  %251 = vst [vmem:[%s3 + $0x10] sm:$0xf] %v235
  %252 = vst [vmem:[%s3 + $0x14] sm:$0xf] %v236
  %253 = vst [vmem:[%s3 + $0x18] sm:$0xf] %v237
  %254 = vst [vmem:[%s3 + $0x1c] sm:$0xf] %v238
  %255 = vst [vmem:[%s3 + $0x20] sm:$0xf] %v239
  %256 = vst [vmem:[%s3 + $0x24] sm:$0xf] %v240
  %257 = vst [vmem:[%s3 + $0x28] sm:$0xf] %v241
  %258 = vst [vmem:[%s3 + $0x2c] sm:$0xf] %v242
  %259 = vst [vmem:[%s3 + $0x30] sm:$0xf] %v243
  %260 = vst [vmem:[%s3 + $0x34] sm:$0xf] %v244
  %261 = vst [vmem:[%s3 + $0x38] sm:$0xf] %v245
  %262 = vst [vmem:[%s3 + $0x3c] sm:$0xf] %v246
  // Predicated region
  $region14: #{_forward_padded.7} parent=0 // pred_check
    _
  $region15: #{_forward_padded.7} parent=0 // pred_check_branch
    %264 = sbr.rel (0) target = $region17
  $region16: #{_forward_padded.7} parent=0 // pred_region
    _
  $region17: #{_forward_padded.7} parent=0 // pred_fallthru
    _
  // Predicated region
  $region18: #{_forward_padded.7} parent=0 // pred_check
    _
  $region19: #{_forward_padded.7} parent=0 // pred_check_branch
    %266 = sbr.rel (0) target = $region21
  $region20: #{_forward_padded.7} parent=0 // pred_region
    _
  $region21: #{_forward_padded.7} parent=0 // pred_fallthru
    _

// kernel: _forward_padded.9
$region0: #{_forward_padded.9}
  #allocation0 [shape = 'u32[]', space=smem, size = 0x4, offset = 0x4, fixed_abs, tag = 'smem constant byte address 0x4 - core index']
  #allocation1 [shape = 'u32[72,128]{1,0:T(1,128)}', space=vmem, size = 0x9000, scoped, tag = 'internal scratch']
  %s0 = inlined_call_operand.vmem [shape: f32[128,128], index: 0, kind: input, shape index: {}]
  %s1 = inlined_call_operand.vmem [shape: f32[128,128], index: 1, kind: input, shape index: {}]
  %s2 = inlined_call_operand.vmem [shape: f32[128,1], index: 2, kind: input, shape index: {}]
  %s3 = inlined_call_operand.vmem [shape: bf16[128,128], index: 3, kind: output, shape index: {}]
  %s4 = sld [smem:[#allocation0]]
  $region22: #{_forward_padded.9} parent=0
    _
  %s6 = ssub.s32 1, %s4
  %s7 = scalar_select 0, %s6, %s4
  // Predicated region
  $region2: #{_forward_padded.9} parent=0 // pred_check
    _
  $region3: #{_forward_padded.9} parent=0 // pred_check_branch
    %9 = sbr.rel (0) target = $region5
  $region4: #{_forward_padded.9} parent=0 // pred_region
    _
  $region5: #{_forward_padded.9} parent=0 // pred_fallthru
    _
  // Predicated region
  $region6: #{_forward_padded.9} parent=0 // pred_check
    _
  $region7: #{_forward_padded.9} parent=0 // pred_check_branch
    %11 = sbr.rel (0) target = $region9
  $region8: #{_forward_padded.9} parent=0 // pred_region
    _
  $region9: #{_forward_padded.9} parent=0 // pred_fallthru
    _
  // Predicated region
  $region10: #{_forward_padded.9} parent=0 // pred_check
    _
  $region11: #{_forward_padded.9} parent=0 // pred_check_branch
    %13 = sbr.rel (0) target = $region13
  $region12: #{_forward_padded.9} parent=0 // pred_region
    _
  $region13: #{_forward_padded.9} parent=0 // pred_fallthru
    _
  %v14 = vld [vmem:[%s0] sm:$0xff]
  %v15 = vld [vmem:[%s0 + $0x8] sm:$0xff]
  %v16 = vld [vmem:[%s0 + $0x10] sm:$0xff]
  %v17 = vld [vmem:[%s0 + $0x18] sm:$0xff]
  %v18 = vld [vmem:[%s0 + $0x20] sm:$0xff]
  %v19 = vld [vmem:[%s0 + $0x28] sm:$0xff]
  %v20 = vld [vmem:[%s0 + $0x30] sm:$0xff]
  %v21 = vld [vmem:[%s0 + $0x38] sm:$0xff]
  %v22 = vld [vmem:[%s0 + $0x40] sm:$0xff]
  %v23 = vld [vmem:[%s0 + $0x48] sm:$0xff]
  %v24 = vld [vmem:[%s0 + $0x50] sm:$0xff]
  %v25 = vld [vmem:[%s0 + $0x58] sm:$0xff]
  %v26 = vld [vmem:[%s0 + $0x60] sm:$0xff]
  %v27 = vld [vmem:[%s0 + $0x68] sm:$0xff]
  %v28 = vld [vmem:[%s0 + $0x70] sm:$0xff]
  %v29 = vld [vmem:[%s0 + $0x78] sm:$0xff]
  %v30 = vpack.c.bf16 %v15, %v14
  %v31 = vpack.c.bf16 %v17, %v16
  %v32 = vpack.c.bf16 %v19, %v18
  %v33 = vpack.c.bf16 %v21, %v20
  %v34 = vpack.c.bf16 %v23, %v22
  %v35 = vpack.c.bf16 %v25, %v24
  %v36 = vpack.c.bf16 %v27, %v26
  %v37 = vpack.c.bf16 %v29, %v28
  %v38 = vld [vmem:[%s1] sm:$0xff]
  %v39 = vld [vmem:[%s1 + $0x8] sm:$0xff]
  %v40 = vld [vmem:[%s1 + $0x10] sm:$0xff]
  %v41 = vld [vmem:[%s1 + $0x18] sm:$0xff]
  %v42 = vld [vmem:[%s1 + $0x20] sm:$0xff]
  %v43 = vld [vmem:[%s1 + $0x28] sm:$0xff]
  %v44 = vld [vmem:[%s1 + $0x30] sm:$0xff]
  %v45 = vld [vmem:[%s1 + $0x38] sm:$0xff]
  %v46 = vld [vmem:[%s1 + $0x40] sm:$0xff]
  %v47 = vld [vmem:[%s1 + $0x48] sm:$0xff]
  %v48 = vld [vmem:[%s1 + $0x50] sm:$0xff]
  %v49 = vld [vmem:[%s1 + $0x58] sm:$0xff]
  %v50 = vld [vmem:[%s1 + $0x60] sm:$0xff]
  %v51 = vld [vmem:[%s1 + $0x68] sm:$0xff]
  %v52 = vld [vmem:[%s1 + $0x70] sm:$0xff]
  %v53 = vld [vmem:[%s1 + $0x78] sm:$0xff]
  %v54 = vpack.c.bf16 %v39, %v38
  %v55 = vpack.c.bf16 %v41, %v40
  %v56 = vpack.c.bf16 %v43, %v42
  %v57 = vpack.c.bf16 %v45, %v44
  %v58 = vpack.c.bf16 %v47, %v46
  %v59 = vpack.c.bf16 %v49, %v48
  %v60 = vpack.c.bf16 %v51, %v50
  %v61 = vpack.c.bf16 %v53, %v52
  %62 = vmatpush.bf16.msra.mxu0 %v61
  %63 = vmatpush.bf16.msra.mxu0 %v60
  %64 = vmatpush.bf16.msra.mxu0 %v59
  %65 = vmatpush.bf16.msra.mxu0 %v58
  %66 = vmatpush.bf16.msra.mxu0 %v57
  %67 = vmatpush.bf16.msra.mxu0 %v56
  %68 = vmatpush.bf16.msra.mxu0 %v55
  %69 = vmatpush.bf16.msra.mxu0 %v54
  %70 = vmatmul.bf16.gmra.mxu0 %v30
  %v71 = vpop.f32.mrf.mxu0
  %v72 = vadd.f32 0.0, %v71
  %v73 = vpop.f32.mrf.mxu0
  %v74 = vadd.f32 0.0, %v73
  %75 = vmatmul.bf16.gmra.mxu0 %v31
  %v76 = vpop.f32.mrf.mxu0
  %v77 = vadd.f32 0.0, %v76
  %v78 = vpop.f32.mrf.mxu0
  %v79 = vadd.f32 0.0, %v78
  %80 = vmatmul.bf16.gmra.mxu0 %v32
  %v81 = vpop.f32.mrf.mxu0
  %v82 = vadd.f32 0.0, %v81
  %v83 = vpop.f32.mrf.mxu0
  %v84 = vadd.f32 0.0, %v83
  %85 = vmatmul.bf16.gmra.mxu0 %v33
  %v86 = vpop.f32.mrf.mxu0
  %v87 = vadd.f32 0.0, %v86
  %v88 = vpop.f32.mrf.mxu0
  %v89 = vadd.f32 0.0, %v88
  %90 = vmatmul.bf16.gmra.mxu0 %v34
  %v91 = vpop.f32.mrf.mxu0
  %v92 = vadd.f32 0.0, %v91
  %v93 = vpop.f32.mrf.mxu0
  %v94 = vadd.f32 0.0, %v93
  %95 = vmatmul.bf16.gmra.mxu0 %v35
  %v96 = vpop.f32.mrf.mxu0
  %v97 = vadd.f32 0.0, %v96
  %v98 = vpop.f32.mrf.mxu0
  %v99 = vadd.f32 0.0, %v98
  %100 = vmatmul.bf16.gmra.mxu0 %v36
  %v101 = vpop.f32.mrf.mxu0
  %v102 = vadd.f32 0.0, %v101
  %v103 = vpop.f32.mrf.mxu0
  %v104 = vadd.f32 0.0, %v103
  %105 = vmatmul.bf16.gmra.mxu0 %v37
  %v106 = vpop.f32.mrf.mxu0
  %v107 = vadd.f32 0.0, %v106
  %v108 = vpop.f32.mrf.mxu0
  %v109 = vadd.f32 0.0, %v108
  %110 = vdwg.mxu0
  %v111 = vld [vmem:[%s2] sm:$0xff]
  %v112 = vld [vmem:[%s2 + $0x8] sm:$0xff]
  %v113 = vld [vmem:[%s2 + $0x10] sm:$0xff]
  %v114 = vld [vmem:[%s2 + $0x18] sm:$0xff]
  %v115 = vld [vmem:[%s2 + $0x20] sm:$0xff]
  %v116 = vld [vmem:[%s2 + $0x28] sm:$0xff]
  %v117 = vld [vmem:[%s2 + $0x30] sm:$0xff]
  %v118 = vld [vmem:[%s2 + $0x38] sm:$0xff]
  %v119 = vld [vmem:[%s2 + $0x40] sm:$0xff]
  %v120 = vld [vmem:[%s2 + $0x48] sm:$0xff]
  %v121 = vld [vmem:[%s2 + $0x50] sm:$0xff]
  %v122 = vld [vmem:[%s2 + $0x58] sm:$0xff]
  %v123 = vld [vmem:[%s2 + $0x60] sm:$0xff]
  %v124 = vld [vmem:[%s2 + $0x68] sm:$0xff]
  %v125 = vld [vmem:[%s2 + $0x70] sm:$0xff]
  %v126 = vld [vmem:[%s2 + $0x78] sm:$0xff]
  %128 = vset.pattern.permute.xlu0 0
  %129 = vperm.xlu0 %128, %v111
  %v130 = vpop.permute.xlu0 %129
  %133 = vset.pattern.permute.xlu0 0
  %134 = vperm.xlu0 %133, %v112
  %v135 = vpop.permute.xlu0 %134
  %138 = vset.pattern.permute.xlu0 0
  %139 = vperm.xlu0 %138, %v113
  %v140 = vpop.permute.xlu0 %139
  %143 = vset.pattern.permute.xlu0 0
  %144 = vperm.xlu0 %143, %v114
  %v145 = vpop.permute.xlu0 %144
  %148 = vset.pattern.permute.xlu0 0
  %149 = vperm.xlu0 %148, %v115
  %v150 = vpop.permute.xlu0 %149
  %153 = vset.pattern.permute.xlu0 0
  %154 = vperm.xlu0 %153, %v116
  %v155 = vpop.permute.xlu0 %154
  %158 = vset.pattern.permute.xlu0 0
  %159 = vperm.xlu0 %158, %v117
  %v160 = vpop.permute.xlu0 %159
  %163 = vset.pattern.permute.xlu0 0
  %164 = vperm.xlu0 %163, %v118
  %v165 = vpop.permute.xlu0 %164
  %168 = vset.pattern.permute.xlu0 0
  %169 = vperm.xlu0 %168, %v119
  %v170 = vpop.permute.xlu0 %169
  %173 = vset.pattern.permute.xlu0 0
  %174 = vperm.xlu0 %173, %v120
  %v175 = vpop.permute.xlu0 %174
  %178 = vset.pattern.permute.xlu0 0
  %179 = vperm.xlu0 %178, %v121
  %v180 = vpop.permute.xlu0 %179
  %183 = vset.pattern.permute.xlu0 0
  %184 = vperm.xlu0 %183, %v122
  %v185 = vpop.permute.xlu0 %184
  %188 = vset.pattern.permute.xlu0 0
  %189 = vperm.xlu0 %188, %v123
  %v190 = vpop.permute.xlu0 %189
  %193 = vset.pattern.permute.xlu0 0
  %194 = vperm.xlu0 %193, %v124
  %v195 = vpop.permute.xlu0 %194
  %198 = vset.pattern.permute.xlu0 0
  %199 = vperm.xlu0 %198, %v125
  %v200 = vpop.permute.xlu0 %199
  %203 = vset.pattern.permute.xlu0 0
  %204 = vperm.xlu0 %203, %v126
  %v205 = vpop.permute.xlu0 %204
  %v207 = vmul.f32 %v130, %v72
  %v208 = vmul.f32 %v135, %v74
  %v209 = vmul.f32 %v140, %v77
  %v210 = vmul.f32 %v145, %v79
  %v211 = vmul.f32 %v150, %v82
  %v212 = vmul.f32 %v155, %v84
  %v213 = vmul.f32 %v160, %v87
  %v214 = vmul.f32 %v165, %v89
  %v215 = vmul.f32 %v170, %v92
  %v216 = vmul.f32 %v175, %v94
  %v217 = vmul.f32 %v180, %v97
  %v218 = vmul.f32 %v185, %v99
  %v219 = vmul.f32 %v190, %v102
  %v220 = vmul.f32 %v195, %v104
  %v221 = vmul.f32 %v200, %v107
  %v222 = vmul.f32 %v205, %v109
  %v223 = vpack.c.bf16 %v207, %v207
  %v224 = vpack.c.bf16 %v208, %v208
  %v225 = vpack.c.bf16 %v209, %v209
  %v226 = vpack.c.bf16 %v210, %v210
  %v227 = vpack.c.bf16 %v211, %v211
  %v228 = vpack.c.bf16 %v212, %v212
  %v229 = vpack.c.bf16 %v213, %v213
  %v230 = vpack.c.bf16 %v214, %v214
  %v231 = vpack.c.bf16 %v215, %v215
  %v232 = vpack.c.bf16 %v216, %v216
  %v233 = vpack.c.bf16 %v217, %v217
  %v234 = vpack.c.bf16 %v218, %v218
  %v235 = vpack.c.bf16 %v219, %v219
  %v236 = vpack.c.bf16 %v220, %v220
  %v237 = vpack.c.bf16 %v221, %v221
  %v238 = vpack.c.bf16 %v222, %v222
  %239 = vst [vmem:[%s3] sm:$0xf] %v223
  %240 = vst [vmem:[%s3 + $0x4] sm:$0xf] %v224
  %241 = vst [vmem:[%s3 + $0x8] sm:$0xf] %v225
  %242 = vst [vmem:[%s3 + $0xc] sm:$0xf] %v226
  %243 = vst [vmem:[%s3 + $0x10] sm:$0xf] %v227
  %244 = vst [vmem:[%s3 + $0x14] sm:$0xf] %v228
  %245 = vst [vmem:[%s3 + $0x18] sm:$0xf] %v229
  %246 = vst [vmem:[%s3 + $0x1c] sm:$0xf] %v230
  %247 = vst [vmem:[%s3 + $0x20] sm:$0xf] %v231
  %248 = vst [vmem:[%s3 + $0x24] sm:$0xf] %v232
  %249 = vst [vmem:[%s3 + $0x28] sm:$0xf] %v233
  %250 = vst [vmem:[%s3 + $0x2c] sm:$0xf] %v234
  %251 = vst [vmem:[%s3 + $0x30] sm:$0xf] %v235
  %252 = vst [vmem:[%s3 + $0x34] sm:$0xf] %v236
  %253 = vst [vmem:[%s3 + $0x38] sm:$0xf] %v237
  %254 = vst [vmem:[%s3 + $0x3c] sm:$0xf] %v238
  // Predicated region
  $region14: #{_forward_padded.9} parent=0 // pred_check
    _
  $region15: #{_forward_padded.9} parent=0 // pred_check_branch
    %256 = sbr.rel (0) target = $region17
  $region16: #{_forward_padded.9} parent=0 // pred_region
    _
  $region17: #{_forward_padded.9} parent=0 // pred_fallthru
    _
  // Predicated region
  $region18: #{_forward_padded.9} parent=0 // pred_check
    _
  $region19: #{_forward_padded.9} parent=0 // pred_check_branch
    %258 = sbr.rel (0) target = $region21
  $region20: #{_forward_padded.9} parent=0 // pred_region
    _
  $region21: #{_forward_padded.9} parent=0 // pred_fallthru
    _

// kernel: _forward_padded.8
$region0: #{_forward_padded.8}
  #allocation0 [shape = 'u32[]', space=smem, size = 0x4, offset = 0x4, fixed_abs, tag = 'smem constant byte address 0x4 - core index']
  #allocation1 [shape = 'u32[72,128]{1,0:T(1,128)}', space=vmem, size = 0x9000, scoped, tag = 'internal scratch']
  #allocation2 [shape = 'f32[128,128]{1,0:T(8,128)}', space=vmem, size = 0x10000, scoped, tag = 'scratch operand']
  %s0 = inlined_call_operand.vmem [shape: s8[128,128], index: 0, kind: input, shape index: {}]
  %s1 = inlined_call_operand.vmem [shape: bf16[128,128], index: 1, kind: input, shape index: {}]
  %s2 = inlined_call_operand.vmem [shape: f32[128,1], index: 2, kind: input, shape index: {}]
  %s3 = inlined_call_operand.vmem [shape: f32[1,128], index: 3, kind: input, shape index: {}]
  %s4 = inlined_call_operand.vmem [shape: f32[128,128], index: 4, kind: output, shape index: {}]
  %s5 = sld [smem:[#allocation0]]
  $region34: #{_forward_padded.8} parent=0
    _
  %s7 = ssub.s32 1, %s5
  %s8 = scalar_select 0, %s7, %s5
  // Predicated region
  $region2: #{_forward_padded.8} parent=0 // pred_check
    _
  $region3: #{_forward_padded.8} parent=0 // pred_check_branch
    %10 = sbr.rel (0) target = $region5
  $region4: #{_forward_padded.8} parent=0 // pred_region
    _
  $region5: #{_forward_padded.8} parent=0 // pred_fallthru
    _
  // Predicated region
  $region6: #{_forward_padded.8} parent=0 // pred_check
    _
  $region7: #{_forward_padded.8} parent=0 // pred_check_branch
    %12 = sbr.rel (0) target = $region9
  $region8: #{_forward_padded.8} parent=0 // pred_region
    _
  $region9: #{_forward_padded.8} parent=0 // pred_fallthru
    _
  // Predicated region
  $region10: #{_forward_padded.8} parent=0 // pred_check
    _
  $region11: #{_forward_padded.8} parent=0 // pred_check_branch
    %14 = sbr.rel (0) target = $region13
  $region12: #{_forward_padded.8} parent=0 // pred_region
    _
  $region13: #{_forward_padded.8} parent=0 // pred_fallthru
    _
  // Predicated region
  $region14: #{_forward_padded.8} parent=0 // pred_check
    _
  $region15: #{_forward_padded.8} parent=0 // pred_check_branch
    %16 = sbr.rel (0) target = $region17
  $region16: #{_forward_padded.8} parent=0 // pred_region
    _
  $region17: #{_forward_padded.8} parent=0 // pred_fallthru
    _
  %p17 = scmp.eq.s32.totalorder 0, 0
  // Predicated region
  $region18: #{_forward_padded.8} parent=0 // pred_check
    %p18 = pneg %p17
  $region19: #{_forward_padded.8} parent=0 // pred_check_branch
    %20 = sbr.rel (%p18) target = $region21
  $region20: #{_forward_padded.8} parent=0 // pred_region
    %21 = vst [vmem:[#allocation2] sm:$0xff] 0.0
    %22 = vst [vmem:[#allocation2 + $0x8] sm:$0xff] 0.0
    %23 = vst [vmem:[#allocation2 + $0x10] sm:$0xff] 0.0
    %24 = vst [vmem:[#allocation2 + $0x18] sm:$0xff] 0.0
    %25 = vst [vmem:[#allocation2 + $0x20] sm:$0xff] 0.0
    %26 = vst [vmem:[#allocation2 + $0x28] sm:$0xff] 0.0
    %27 = vst [vmem:[#allocation2 + $0x30] sm:$0xff] 0.0
    %28 = vst [vmem:[#allocation2 + $0x38] sm:$0xff] 0.0
    %29 = vst [vmem:[#allocation2 + $0x40] sm:$0xff] 0.0
    %30 = vst [vmem:[#allocation2 + $0x48] sm:$0xff] 0.0
    %31 = vst [vmem:[#allocation2 + $0x50] sm:$0xff] 0.0
    %32 = vst [vmem:[#allocation2 + $0x58] sm:$0xff] 0.0
    %33 = vst [vmem:[#allocation2 + $0x60] sm:$0xff] 0.0
    %34 = vst [vmem:[#allocation2 + $0x68] sm:$0xff] 0.0
    %35 = vst [vmem:[#allocation2 + $0x70] sm:$0xff] 0.0
    %36 = vst [vmem:[#allocation2 + $0x78] sm:$0xff] 0.0
  $region21: #{_forward_padded.8} parent=0 // pred_fallthru
    _
  %v37 = vld [vmem:[%s0] sm:$0xff]
  %v38 = vld [vmem:[%s0 + $0x8] sm:$0xff]
  %v39 = vld [vmem:[%s0 + $0x10] sm:$0xff]
  %v40 = vld [vmem:[%s0 + $0x18] sm:$0xff]
  %v41 = vunpack.c.0.s8 %v37
  %v42 = vunpack.c.1.s8 %v37
  %v43 = vunpack.c.2.s8 %v37
  %v44 = vunpack.c.3.s8 %v37
  %v45 = vunpack.c.0.s8 %v38
  %v46 = vunpack.c.1.s8 %v38
  %v47 = vunpack.c.2.s8 %v38
  %v48 = vunpack.c.3.s8 %v38
  %v49 = vunpack.c.0.s8 %v39
  %v50 = vunpack.c.1.s8 %v39
  %v51 = vunpack.c.2.s8 %v39
  %v52 = vunpack.c.3.s8 %v39
  %v53 = vunpack.c.0.s8 %v40
  %v54 = vunpack.c.1.s8 %v40
  %v55 = vunpack.c.2.s8 %v40
  %v56 = vunpack.c.3.s8 %v40
  %v57 = vcvt.s32.f32 %v41
  %v58 = vcvt.s32.f32 %v42
  %v59 = vcvt.s32.f32 %v43
  %v60 = vcvt.s32.f32 %v44
  %v61 = vcvt.s32.f32 %v45
  %v62 = vcvt.s32.f32 %v46
  %v63 = vcvt.s32.f32 %v47
  %v64 = vcvt.s32.f32 %v48
  %v65 = vcvt.s32.f32 %v49
  %v66 = vcvt.s32.f32 %v50
  %v67 = vcvt.s32.f32 %v51
  %v68 = vcvt.s32.f32 %v52
  %v69 = vcvt.s32.f32 %v53
  %v70 = vcvt.s32.f32 %v54
  %v71 = vcvt.s32.f32 %v55
  %v72 = vcvt.s32.f32 %v56
  %v73 = vpack.c.bf16 %v58, %v57
  %v74 = vpack.c.bf16 %v60, %v59
  %v75 = vpack.c.bf16 %v62, %v61
  %v76 = vpack.c.bf16 %v64, %v63
  %v77 = vpack.c.bf16 %v66, %v65
  %v78 = vpack.c.bf16 %v68, %v67
  %v79 = vpack.c.bf16 %v70, %v69
  %v80 = vpack.c.bf16 %v72, %v71
  %s81 = smul.u32 0, 128
  %s82 = sshra.s32 %s81, 3
  %s83 = sand.u32 %s81, 7
  %s84 = smul.addr %s82, 4
  %s85 = scalar_lea.vmem %s1, %s84
  %v86 = vld [vmem:[%s85] sm:$0xf]
  %v87 = vld [vmem:[%s85 + $0x4] sm:$0xf]
  %v88 = vld [vmem:[%s85 + $0x8] sm:$0xf]
  %v89 = vld [vmem:[%s85 + $0xc] sm:$0xf]
  %v90 = vld [vmem:[%s85 + $0x10] sm:$0xf]
  %v91 = vld [vmem:[%s85 + $0x14] sm:$0xf]
  %v92 = vld [vmem:[%s85 + $0x18] sm:$0xf]
  %v93 = vld [vmem:[%s85 + $0x1c] sm:$0xf]
  %v94 = vld [vmem:[%s85 + $0x20] sm:$0xf]
  %v95 = vld [vmem:[%s85 + $0x24] sm:$0xf]
  %v96 = vld [vmem:[%s85 + $0x28] sm:$0xf]
  %v97 = vld [vmem:[%s85 + $0x2c] sm:$0xf]
  %v98 = vld [vmem:[%s85 + $0x30] sm:$0xf]
  %v99 = vld [vmem:[%s85 + $0x34] sm:$0xf]
  %v100 = vld [vmem:[%s85 + $0x38] sm:$0xf]
  %v101 = vld [vmem:[%s85 + $0x3c] sm:$0xf]
  %v102 = vld [vmem:[#allocation2] sm:$0xff]
  %v103 = vld [vmem:[#allocation2 + $0x8] sm:$0xff]
  %v104 = vld [vmem:[#allocation2 + $0x10] sm:$0xff]
  %v105 = vld [vmem:[#allocation2 + $0x18] sm:$0xff]
  %v106 = vld [vmem:[#allocation2 + $0x20] sm:$0xff]
  %v107 = vld [vmem:[#allocation2 + $0x28] sm:$0xff]
  %v108 = vld [vmem:[#allocation2 + $0x30] sm:$0xff]
  %v109 = vld [vmem:[#allocation2 + $0x38] sm:$0xff]
  %v110 = vld [vmem:[#allocation2 + $0x40] sm:$0xff]
  %v111 = vld [vmem:[#allocation2 + $0x48] sm:$0xff]
  %v112 = vld [vmem:[#allocation2 + $0x50] sm:$0xff]
  %v113 = vld [vmem:[#allocation2 + $0x58] sm:$0xff]
  %v114 = vld [vmem:[#allocation2 + $0x60] sm:$0xff]
  %v115 = vld [vmem:[#allocation2 + $0x68] sm:$0xff]
  %v116 = vld [vmem:[#allocation2 + $0x70] sm:$0xff]
  %v117 = vld [vmem:[#allocation2 + $0x78] sm:$0xff]
  %v134 = vunpack.c.l.b16 %v86
  %v135 = vunpack.c.l.b16 %v87
  %v136 = vunpack.c.l.b16 %v88
  %v137 = vunpack.c.l.b16 %v89
  %v138 = vunpack.c.l.b16 %v90
  %v139 = vunpack.c.l.b16 %v91
  %v140 = vunpack.c.l.b16 %v92
  %v141 = vunpack.c.l.b16 %v93
  %v142 = vunpack.c.l.b16 %v94
  %v143 = vunpack.c.l.b16 %v95
  %v144 = vunpack.c.l.b16 %v96
  %v145 = vunpack.c.l.b16 %v97
  %v146 = vunpack.c.l.b16 %v98
  %v147 = vunpack.c.l.b16 %v99
  %v148 = vunpack.c.l.b16 %v100
  %v149 = vunpack.c.l.b16 %v101
  %v150 = vpack.c.b16 %v135, %v134
  %v151 = vpack.c.b16 %v137, %v136
  %v152 = vpack.c.b16 %v139, %v138
  %v153 = vpack.c.b16 %v141, %v140
  %v154 = vpack.c.b16 %v143, %v142
  %v155 = vpack.c.b16 %v145, %v144
  %v156 = vpack.c.b16 %v147, %v146
  %v157 = vpack.c.b16 %v149, %v148
  %166 = vmatpush.bf16.msra.mxu0 %v157
  %167 = vmatpush.bf16.msra.mxu0 %v156
  %168 = vmatpush.bf16.msra.mxu0 %v155
  %169 = vmatpush.bf16.msra.mxu0 %v154
  %170 = vmatpush.bf16.msra.mxu0 %v153
  %171 = vmatpush.bf16.msra.mxu0 %v152
  %172 = vmatpush.bf16.msra.mxu0 %v151
  %173 = vmatpush.bf16.msra.mxu0 %v150
  %174 = vmatmul.bf16.gmra.mxu0 %v73
  %v175 = vpop.f32.mrf.mxu0
  %v176 = vadd.f32 0.0, %v175
  %v177 = vpop.f32.mrf.mxu0
  %v178 = vadd.f32 0.0, %v177
  %179 = vmatmul.bf16.gmra.mxu0 %v74
  %v180 = vpop.f32.mrf.mxu0
  %v181 = vadd.f32 0.0, %v180
  %v182 = vpop.f32.mrf.mxu0
  %v183 = vadd.f32 0.0, %v182
  %184 = vmatmul.bf16.gmra.mxu0 %v75
  %v185 = vpop.f32.mrf.mxu0
  %v186 = vadd.f32 0.0, %v185
  %v187 = vpop.f32.mrf.mxu0
  %v188 = vadd.f32 0.0, %v187
  %189 = vmatmul.bf16.gmra.mxu0 %v76
  %v190 = vpop.f32.mrf.mxu0
  %v191 = vadd.f32 0.0, %v190
  %v192 = vpop.f32.mrf.mxu0
  %v193 = vadd.f32 0.0, %v192
  %194 = vmatmul.bf16.gmra.mxu0 %v77
  %v195 = vpop.f32.mrf.mxu0
  %v196 = vadd.f32 0.0, %v195
  %v197 = vpop.f32.mrf.mxu0
  %v198 = vadd.f32 0.0, %v197
  %199 = vmatmul.bf16.gmra.mxu0 %v78
  %v200 = vpop.f32.mrf.mxu0
  %v201 = vadd.f32 0.0, %v200
  %v202 = vpop.f32.mrf.mxu0
  %v203 = vadd.f32 0.0, %v202
  %204 = vmatmul.bf16.gmra.mxu0 %v79
  %v205 = vpop.f32.mrf.mxu0
  %v206 = vadd.f32 0.0, %v205
  %v207 = vpop.f32.mrf.mxu0
  %v208 = vadd.f32 0.0, %v207
  %209 = vmatmul.bf16.gmra.mxu0 %v80
  %v210 = vpop.f32.mrf.mxu0
  %v211 = vadd.f32 0.0, %v210
  %v212 = vpop.f32.mrf.mxu0
  %v213 = vadd.f32 0.0, %v212
  %214 = vdwg.mxu0
  %v215 = vadd.f32 %v102, %v176
  %v216 = vadd.f32 %v103, %v178
  %v217 = vadd.f32 %v104, %v181
  %v218 = vadd.f32 %v105, %v183
  %v219 = vadd.f32 %v106, %v186
  %v220 = vadd.f32 %v107, %v188
  %v221 = vadd.f32 %v108, %v191
  %v222 = vadd.f32 %v109, %v193
  %v223 = vadd.f32 %v110, %v196
  %v224 = vadd.f32 %v111, %v198
  %v225 = vadd.f32 %v112, %v201
  %v226 = vadd.f32 %v113, %v203
  %v227 = vadd.f32 %v114, %v206
  %v228 = vadd.f32 %v115, %v208
  %v229 = vadd.f32 %v116, %v211
  %v230 = vadd.f32 %v117, %v213
  %231 = vst [vmem:[#allocation2] sm:$0xff] %v215
  %232 = vst [vmem:[#allocation2 + $0x8] sm:$0xff] %v216
  %233 = vst [vmem:[#allocation2 + $0x10] sm:$0xff] %v217
  %234 = vst [vmem:[#allocation2 + $0x18] sm:$0xff] %v218
  %235 = vst [vmem:[#allocation2 + $0x20] sm:$0xff] %v219
  %236 = vst [vmem:[#allocation2 + $0x28] sm:$0xff] %v220
  %237 = vst [vmem:[#allocation2 + $0x30] sm:$0xff] %v221
  %238 = vst [vmem:[#allocation2 + $0x38] sm:$0xff] %v222
  %239 = vst [vmem:[#allocation2 + $0x40] sm:$0xff] %v223
  %240 = vst [vmem:[#allocation2 + $0x48] sm:$0xff] %v224
  %241 = vst [vmem:[#allocation2 + $0x50] sm:$0xff] %v225
  %242 = vst [vmem:[#allocation2 + $0x58] sm:$0xff] %v226
  %243 = vst [vmem:[#allocation2 + $0x60] sm:$0xff] %v227
  %244 = vst [vmem:[#allocation2 + $0x68] sm:$0xff] %v228
  %245 = vst [vmem:[#allocation2 + $0x70] sm:$0xff] %v229
  %246 = vst [vmem:[#allocation2 + $0x78] sm:$0xff] %v230
  // Predicated region
  $region22: #{_forward_padded.8} parent=0 // pred_check
    %p247 = pneg %p17
  $region23: #{_forward_padded.8} parent=0 // pred_check_branch
    %249 = sbr.rel (%p247) target = $region25
  $region24: #{_forward_padded.8} parent=0 // pred_region
    %v250 = vld [vmem:[%s2] sm:$0xff]
    %v251 = vld [vmem:[%s2 + $0x8] sm:$0xff]
    %v252 = vld [vmem:[%s2 + $0x10] sm:$0xff]
    %v253 = vld [vmem:[%s2 + $0x18] sm:$0xff]
    %v254 = vld [vmem:[%s2 + $0x20] sm:$0xff]
    %v255 = vld [vmem:[%s2 + $0x28] sm:$0xff]
    %v256 = vld [vmem:[%s2 + $0x30] sm:$0xff]
    %v257 = vld [vmem:[%s2 + $0x38] sm:$0xff]
    %v258 = vld [vmem:[%s2 + $0x40] sm:$0xff]
    %v259 = vld [vmem:[%s2 + $0x48] sm:$0xff]
    %v260 = vld [vmem:[%s2 + $0x50] sm:$0xff]
    %v261 = vld [vmem:[%s2 + $0x58] sm:$0xff]
    %v262 = vld [vmem:[%s2 + $0x60] sm:$0xff]
    %v263 = vld [vmem:[%s2 + $0x68] sm:$0xff]
    %v264 = vld [vmem:[%s2 + $0x70] sm:$0xff]
    %v265 = vld [vmem:[%s2 + $0x78] sm:$0xff]
    %v266 = vld [vmem:[#allocation2] sm:$0xff]
    %v267 = vld [vmem:[#allocation2 + $0x8] sm:$0xff]
    %v268 = vld [vmem:[#allocation2 + $0x10] sm:$0xff]
    %v269 = vld [vmem:[#allocation2 + $0x18] sm:$0xff]
    %v270 = vld [vmem:[#allocation2 + $0x20] sm:$0xff]
    %v271 = vld [vmem:[#allocation2 + $0x28] sm:$0xff]
    %v272 = vld [vmem:[#allocation2 + $0x30] sm:$0xff]
    %v273 = vld [vmem:[#allocation2 + $0x38] sm:$0xff]
    %v274 = vld [vmem:[#allocation2 + $0x40] sm:$0xff]
    %v275 = vld [vmem:[#allocation2 + $0x48] sm:$0xff]
    %v276 = vld [vmem:[#allocation2 + $0x50] sm:$0xff]
    %v277 = vld [vmem:[#allocation2 + $0x58] sm:$0xff]
    %v278 = vld [vmem:[#allocation2 + $0x60] sm:$0xff]
    %v279 = vld [vmem:[#allocation2 + $0x68] sm:$0xff]
    %v280 = vld [vmem:[#allocation2 + $0x70] sm:$0xff]
    %v281 = vld [vmem:[#allocation2 + $0x78] sm:$0xff]
    %283 = vset.pattern.permute.xlu0 0
    %284 = vperm.xlu0 %283, %v250
    %v285 = vpop.permute.xlu0 %284
    %288 = vset.pattern.permute.xlu0 0
    %289 = vperm.xlu0 %288, %v251
    %v290 = vpop.permute.xlu0 %289
    %293 = vset.pattern.permute.xlu0 0
    %294 = vperm.xlu0 %293, %v252
    %v295 = vpop.permute.xlu0 %294
    %298 = vset.pattern.permute.xlu0 0
    %299 = vperm.xlu0 %298, %v253
    %v300 = vpop.permute.xlu0 %299
    %303 = vset.pattern.permute.xlu0 0
    %304 = vperm.xlu0 %303, %v254
    %v305 = vpop.permute.xlu0 %304
    %308 = vset.pattern.permute.xlu0 0
    %309 = vperm.xlu0 %308, %v255
    %v310 = vpop.permute.xlu0 %309
    %313 = vset.pattern.permute.xlu0 0
    %314 = vperm.xlu0 %313, %v256
    %v315 = vpop.permute.xlu0 %314
    %318 = vset.pattern.permute.xlu0 0
    %319 = vperm.xlu0 %318, %v257
    %v320 = vpop.permute.xlu0 %319
    %323 = vset.pattern.permute.xlu0 0
    %324 = vperm.xlu0 %323, %v258
    %v325 = vpop.permute.xlu0 %324
    %328 = vset.pattern.permute.xlu0 0
    %329 = vperm.xlu0 %328, %v259
    %v330 = vpop.permute.xlu0 %329
    %333 = vset.pattern.permute.xlu0 0
    %334 = vperm.xlu0 %333, %v260
    %v335 = vpop.permute.xlu0 %334
    %338 = vset.pattern.permute.xlu0 0
    %339 = vperm.xlu0 %338, %v261
    %v340 = vpop.permute.xlu0 %339
    %343 = vset.pattern.permute.xlu0 0
    %344 = vperm.xlu0 %343, %v262
    %v345 = vpop.permute.xlu0 %344
    %348 = vset.pattern.permute.xlu0 0
    %349 = vperm.xlu0 %348, %v263
    %v350 = vpop.permute.xlu0 %349
    %353 = vset.pattern.permute.xlu0 0
    %354 = vperm.xlu0 %353, %v264
    %v355 = vpop.permute.xlu0 %354
    %358 = vset.pattern.permute.xlu0 0
    %359 = vperm.xlu0 %358, %v265
    %v360 = vpop.permute.xlu0 %359
    %v362 = vmul.f32 %v285, %v266
    %v363 = vmul.f32 %v290, %v267
    %v364 = vmul.f32 %v295, %v268
    %v365 = vmul.f32 %v300, %v269
    %v366 = vmul.f32 %v305, %v270
    %v367 = vmul.f32 %v310, %v271
    %v368 = vmul.f32 %v315, %v272
    %v369 = vmul.f32 %v320, %v273
    %v370 = vmul.f32 %v325, %v274
    %v371 = vmul.f32 %v330, %v275
    %v372 = vmul.f32 %v335, %v276
    %v373 = vmul.f32 %v340, %v277
    %v374 = vmul.f32 %v345, %v278
    %v375 = vmul.f32 %v350, %v279
    %v376 = vmul.f32 %v355, %v280
    %v377 = vmul.f32 %v360, %v281
    %v378 = vld [vmem:[%s3] sm:$0x1]
    %v380 = vperm.slane %v378, 0
    %v382 = vadd.f32 %v362, %v380
    %v383 = vadd.f32 %v363, %v380
    %v384 = vadd.f32 %v364, %v380
    %v385 = vadd.f32 %v365, %v380
    %v386 = vadd.f32 %v366, %v380
    %v387 = vadd.f32 %v367, %v380
    %v388 = vadd.f32 %v368, %v380
    %v389 = vadd.f32 %v369, %v380
    %v390 = vadd.f32 %v370, %v380
    %v391 = vadd.f32 %v371, %v380
    %v392 = vadd.f32 %v372, %v380
    %v393 = vadd.f32 %v373, %v380
    %v394 = vadd.f32 %v374, %v380
    %v395 = vadd.f32 %v375, %v380
    %v396 = vadd.f32 %v376, %v380
    %v397 = vadd.f32 %v377, %v380
    %v398 = vmax.f32 %v382, 0.0
    %v399 = vmax.f32 %v383, 0.0
    %v400 = vmax.f32 %v384, 0.0
    %v401 = vmax.f32 %v385, 0.0
    %v402 = vmax.f32 %v386, 0.0
    %v403 = vmax.f32 %v387, 0.0
    %v404 = vmax.f32 %v388, 0.0
    %v405 = vmax.f32 %v389, 0.0
    %v406 = vmax.f32 %v390, 0.0
    %v407 = vmax.f32 %v391, 0.0
    %v408 = vmax.f32 %v392, 0.0
    %v409 = vmax.f32 %v393, 0.0
    %v410 = vmax.f32 %v394, 0.0
    %v411 = vmax.f32 %v395, 0.0
    %v412 = vmax.f32 %v396, 0.0
    %v413 = vmax.f32 %v397, 0.0
    %414 = vst [vmem:[%s4] sm:$0xff] %v398
    %415 = vst [vmem:[%s4 + $0x8] sm:$0xff] %v399
    %416 = vst [vmem:[%s4 + $0x10] sm:$0xff] %v400
    %417 = vst [vmem:[%s4 + $0x18] sm:$0xff] %v401
    %418 = vst [vmem:[%s4 + $0x20] sm:$0xff] %v402
    %419 = vst [vmem:[%s4 + $0x28] sm:$0xff] %v403
    %420 = vst [vmem:[%s4 + $0x30] sm:$0xff] %v404
    %421 = vst [vmem:[%s4 + $0x38] sm:$0xff] %v405
    %422 = vst [vmem:[%s4 + $0x40] sm:$0xff] %v406
    %423 = vst [vmem:[%s4 + $0x48] sm:$0xff] %v407
    %424 = vst [vmem:[%s4 + $0x50] sm:$0xff] %v408
    %425 = vst [vmem:[%s4 + $0x58] sm:$0xff] %v409
    %426 = vst [vmem:[%s4 + $0x60] sm:$0xff] %v410
    %427 = vst [vmem:[%s4 + $0x68] sm:$0xff] %v411
    %428 = vst [vmem:[%s4 + $0x70] sm:$0xff] %v412
    %429 = vst [vmem:[%s4 + $0x78] sm:$0xff] %v413
  $region25: #{_forward_padded.8} parent=0 // pred_fallthru
    _
  // Predicated region
  $region26: #{_forward_padded.8} parent=0 // pred_check
    _
  $region27: #{_forward_padded.8} parent=0 // pred_check_branch
    %431 = sbr.rel (0) target = $region29
  $region28: #{_forward_padded.8} parent=0 // pred_region
    _
  $region29: #{_forward_padded.8} parent=0 // pred_fallthru
    _
  // Predicated region
  $region30: #{_forward_padded.8} parent=0 // pred_check
    _
  $region31: #{_forward_padded.8} parent=0 // pred_check_branch
    %433 = sbr.rel (0) target = $region33
  $region32: #{_forward_padded.8} parent=0 // pred_region
    _
  $region33: #{_forward_padded.8} parent=0 // pred_fallthru
    _

// kernel: _forward_padded.12
$region0: #{_forward_padded.12}
  #allocation0 [shape = 'u32[]', space=smem, size = 0x4, offset = 0x4, fixed_abs, tag = 'smem constant byte address 0x4 - core index']
  #allocation1 [shape = 'u32[72,128]{1,0:T(1,128)}', space=vmem, size = 0x9000, scoped, tag = 'internal scratch']
  #allocation2 [shape = 'f32[128,128]{1,0:T(8,128)}', space=vmem, size = 0x10000, scoped, tag = 'scratch operand']
  %s0 = inlined_call_operand.vmem [shape: s8[128,128], index: 0, kind: input, shape index: {}]
  %s1 = inlined_call_operand.vmem [shape: bf16[128,128], index: 1, kind: input, shape index: {}]
  %s2 = inlined_call_operand.vmem [shape: f32[128,1], index: 2, kind: input, shape index: {}]
  %s3 = inlined_call_operand.vmem [shape: f32[1,128], index: 3, kind: input, shape index: {}]
  %s4 = inlined_call_operand.vmem [shape: f32[128,128], index: 4, kind: output, shape index: {}]
  %s5 = sld [smem:[#allocation0]]
  $region34: #{_forward_padded.12} parent=0
    _
  %s7 = ssub.s32 1, %s5
  %s8 = scalar_select 0, %s7, %s5
  // Predicated region
  $region2: #{_forward_padded.12} parent=0 // pred_check
    _
  $region3: #{_forward_padded.12} parent=0 // pred_check_branch
    %10 = sbr.rel (0) target = $region5
  $region4: #{_forward_padded.12} parent=0 // pred_region
    _
  $region5: #{_forward_padded.12} parent=0 // pred_fallthru
    _
  // Predicated region
  $region6: #{_forward_padded.12} parent=0 // pred_check
    _
  $region7: #{_forward_padded.12} parent=0 // pred_check_branch
    %12 = sbr.rel (0) target = $region9
  $region8: #{_forward_padded.12} parent=0 // pred_region
    _
  $region9: #{_forward_padded.12} parent=0 // pred_fallthru
    _
  // Predicated region
  $region10: #{_forward_padded.12} parent=0 // pred_check
    _
  $region11: #{_forward_padded.12} parent=0 // pred_check_branch
    %14 = sbr.rel (0) target = $region13
  $region12: #{_forward_padded.12} parent=0 // pred_region
    _
  $region13: #{_forward_padded.12} parent=0 // pred_fallthru
    _
  // Predicated region
  $region14: #{_forward_padded.12} parent=0 // pred_check
    _
  $region15: #{_forward_padded.12} parent=0 // pred_check_branch
    %16 = sbr.rel (0) target = $region17
  $region16: #{_forward_padded.12} parent=0 // pred_region
    _
  $region17: #{_forward_padded.12} parent=0 // pred_fallthru
    _
  %p17 = scmp.eq.s32.totalorder 0, 0
  // Predicated region
  $region18: #{_forward_padded.12} parent=0 // pred_check
    %p18 = pneg %p17
  $region19: #{_forward_padded.12} parent=0 // pred_check_branch
    %20 = sbr.rel (%p18) target = $region21
  $region20: #{_forward_padded.12} parent=0 // pred_region
    %21 = vst [vmem:[#allocation2] sm:$0xff] 0.0
    %22 = vst [vmem:[#allocation2 + $0x8] sm:$0xff] 0.0
    %23 = vst [vmem:[#allocation2 + $0x10] sm:$0xff] 0.0
    %24 = vst [vmem:[#allocation2 + $0x18] sm:$0xff] 0.0
    %25 = vst [vmem:[#allocation2 + $0x20] sm:$0xff] 0.0
    %26 = vst [vmem:[#allocation2 + $0x28] sm:$0xff] 0.0
    %27 = vst [vmem:[#allocation2 + $0x30] sm:$0xff] 0.0
    %28 = vst [vmem:[#allocation2 + $0x38] sm:$0xff] 0.0
    %29 = vst [vmem:[#allocation2 + $0x40] sm:$0xff] 0.0
    %30 = vst [vmem:[#allocation2 + $0x48] sm:$0xff] 0.0
    %31 = vst [vmem:[#allocation2 + $0x50] sm:$0xff] 0.0
    %32 = vst [vmem:[#allocation2 + $0x58] sm:$0xff] 0.0
    %33 = vst [vmem:[#allocation2 + $0x60] sm:$0xff] 0.0
    %34 = vst [vmem:[#allocation2 + $0x68] sm:$0xff] 0.0
    %35 = vst [vmem:[#allocation2 + $0x70] sm:$0xff] 0.0
    %36 = vst [vmem:[#allocation2 + $0x78] sm:$0xff] 0.0
  $region21: #{_forward_padded.12} parent=0 // pred_fallthru
    _
  %v37 = vld [vmem:[%s0] sm:$0xff]
  %v38 = vld [vmem:[%s0 + $0x8] sm:$0xff]
  %v39 = vld [vmem:[%s0 + $0x10] sm:$0xff]
  %v40 = vld [vmem:[%s0 + $0x18] sm:$0xff]
  %v41 = vunpack.c.0.s8 %v37
  %v42 = vunpack.c.1.s8 %v37
  %v43 = vunpack.c.2.s8 %v37
  %v44 = vunpack.c.3.s8 %v37
  %v45 = vunpack.c.0.s8 %v38
  %v46 = vunpack.c.1.s8 %v38
  %v47 = vunpack.c.2.s8 %v38
  %v48 = vunpack.c.3.s8 %v38
  %v49 = vunpack.c.0.s8 %v39
  %v50 = vunpack.c.1.s8 %v39
  %v51 = vunpack.c.2.s8 %v39
  %v52 = vunpack.c.3.s8 %v39
  %v53 = vunpack.c.0.s8 %v40
  %v54 = vunpack.c.1.s8 %v40
  %v55 = vunpack.c.2.s8 %v40
  %v56 = vunpack.c.3.s8 %v40
  %v57 = vcvt.s32.f32 %v41
  %v58 = vcvt.s32.f32 %v42
  %v59 = vcvt.s32.f32 %v43
  %v60 = vcvt.s32.f32 %v44
  %v61 = vcvt.s32.f32 %v45
  %v62 = vcvt.s32.f32 %v46
  %v63 = vcvt.s32.f32 %v47
  %v64 = vcvt.s32.f32 %v48
  %v65 = vcvt.s32.f32 %v49
  %v66 = vcvt.s32.f32 %v50
  %v67 = vcvt.s32.f32 %v51
  %v68 = vcvt.s32.f32 %v52
  %v69 = vcvt.s32.f32 %v53
  %v70 = vcvt.s32.f32 %v54
  %v71 = vcvt.s32.f32 %v55
  %v72 = vcvt.s32.f32 %v56
  %v73 = vpack.c.bf16 %v58, %v57
  %v74 = vpack.c.bf16 %v60, %v59
  %v75 = vpack.c.bf16 %v62, %v61
  %v76 = vpack.c.bf16 %v64, %v63
  %v77 = vpack.c.bf16 %v66, %v65
  %v78 = vpack.c.bf16 %v68, %v67
  %v79 = vpack.c.bf16 %v70, %v69
  %v80 = vpack.c.bf16 %v72, %v71
  %s81 = smul.u32 0, 128
  %s82 = sshra.s32 %s81, 3
  %s83 = sand.u32 %s81, 7
  %s84 = smul.addr %s82, 4
  %s85 = scalar_lea.vmem %s1, %s84
  %v86 = vld [vmem:[%s85] sm:$0xf]
  %v87 = vld [vmem:[%s85 + $0x4] sm:$0xf]
  %v88 = vld [vmem:[%s85 + $0x8] sm:$0xf]
  %v89 = vld [vmem:[%s85 + $0xc] sm:$0xf]
  %v90 = vld [vmem:[%s85 + $0x10] sm:$0xf]
  %v91 = vld [vmem:[%s85 + $0x14] sm:$0xf]
  %v92 = vld [vmem:[%s85 + $0x18] sm:$0xf]
  %v93 = vld [vmem:[%s85 + $0x1c] sm:$0xf]
  %v94 = vld [vmem:[%s85 + $0x20] sm:$0xf]
  %v95 = vld [vmem:[%s85 + $0x24] sm:$0xf]
  %v96 = vld [vmem:[%s85 + $0x28] sm:$0xf]
  %v97 = vld [vmem:[%s85 + $0x2c] sm:$0xf]
  %v98 = vld [vmem:[%s85 + $0x30] sm:$0xf]
  %v99 = vld [vmem:[%s85 + $0x34] sm:$0xf]
  %v100 = vld [vmem:[%s85 + $0x38] sm:$0xf]
  %v101 = vld [vmem:[%s85 + $0x3c] sm:$0xf]
  %v102 = vld [vmem:[#allocation2] sm:$0xff]
  %v103 = vld [vmem:[#allocation2 + $0x8] sm:$0xff]
  %v104 = vld [vmem:[#allocation2 + $0x10] sm:$0xff]
  %v105 = vld [vmem:[#allocation2 + $0x18] sm:$0xff]
  %v106 = vld [vmem:[#allocation2 + $0x20] sm:$0xff]
  %v107 = vld [vmem:[#allocation2 + $0x28] sm:$0xff]
  %v108 = vld [vmem:[#allocation2 + $0x30] sm:$0xff]
  %v109 = vld [vmem:[#allocation2 + $0x38] sm:$0xff]
  %v110 = vld [vmem:[#allocation2 + $0x40] sm:$0xff]
  %v111 = vld [vmem:[#allocation2 + $0x48] sm:$0xff]
  %v112 = vld [vmem:[#allocation2 + $0x50] sm:$0xff]
  %v113 = vld [vmem:[#allocation2 + $0x58] sm:$0xff]
  %v114 = vld [vmem:[#allocation2 + $0x60] sm:$0xff]
  %v115 = vld [vmem:[#allocation2 + $0x68] sm:$0xff]
  %v116 = vld [vmem:[#allocation2 + $0x70] sm:$0xff]
  %v117 = vld [vmem:[#allocation2 + $0x78] sm:$0xff]
  %v134 = vunpack.c.l.b16 %v86
  %v135 = vunpack.c.l.b16 %v87
  %v136 = vunpack.c.l.b16 %v88
  %v137 = vunpack.c.l.b16 %v89
  %v138 = vunpack.c.l.b16 %v90
  %v139 = vunpack.c.l.b16 %v91
  %v140 = vunpack.c.l.b16 %v92
  %v141 = vunpack.c.l.b16 %v93
  %v142 = vunpack.c.l.b16 %v94
  %v143 = vunpack.c.l.b16 %v95
  %v144 = vunpack.c.l.b16 %v96
  %v145 = vunpack.c.l.b16 %v97
  %v146 = vunpack.c.l.b16 %v98
  %v147 = vunpack.c.l.b16 %v99
  %v148 = vunpack.c.l.b16 %v100
  %v149 = vunpack.c.l.b16 %v101
  %v150 = vpack.c.b16 %v135, %v134
  %v151 = vpack.c.b16 %v137, %v136
  %v152 = vpack.c.b16 %v139, %v138
  %v153 = vpack.c.b16 %v141, %v140
  %v154 = vpack.c.b16 %v143, %v142
  %v155 = vpack.c.b16 %v145, %v144
  %v156 = vpack.c.b16 %v147, %v146
  %v157 = vpack.c.b16 %v149, %v148
  %166 = vmatpush.bf16.msra.mxu0 %v157
  %167 = vmatpush.bf16.msra.mxu0 %v156
  %168 = vmatpush.bf16.msra.mxu0 %v155
  %169 = vmatpush.bf16.msra.mxu0 %v154
  %170 = vmatpush.bf16.msra.mxu0 %v153
  %171 = vmatpush.bf16.msra.mxu0 %v152
  %172 = vmatpush.bf16.msra.mxu0 %v151
  %173 = vmatpush.bf16.msra.mxu0 %v150
  %174 = vmatmul.bf16.gmra.mxu0 %v73
  %v175 = vpop.f32.mrf.mxu0
  %v176 = vadd.f32 0.0, %v175
  %v177 = vpop.f32.mrf.mxu0
  %v178 = vadd.f32 0.0, %v177
  %179 = vmatmul.bf16.gmra.mxu0 %v74
  %v180 = vpop.f32.mrf.mxu0
  %v181 = vadd.f32 0.0, %v180
  %v182 = vpop.f32.mrf.mxu0
  %v183 = vadd.f32 0.0, %v182
  %184 = vmatmul.bf16.gmra.mxu0 %v75
  %v185 = vpop.f32.mrf.mxu0
  %v186 = vadd.f32 0.0, %v185
  %v187 = vpop.f32.mrf.mxu0
  %v188 = vadd.f32 0.0, %v187
  %189 = vmatmul.bf16.gmra.mxu0 %v76
  %v190 = vpop.f32.mrf.mxu0
  %v191 = vadd.f32 0.0, %v190
  %v192 = vpop.f32.mrf.mxu0
  %v193 = vadd.f32 0.0, %v192
  %194 = vmatmul.bf16.gmra.mxu0 %v77
  %v195 = vpop.f32.mrf.mxu0
  %v196 = vadd.f32 0.0, %v195
  %v197 = vpop.f32.mrf.mxu0
  %v198 = vadd.f32 0.0, %v197
  %199 = vmatmul.bf16.gmra.mxu0 %v78
  %v200 = vpop.f32.mrf.mxu0
  %v201 = vadd.f32 0.0, %v200
  %v202 = vpop.f32.mrf.mxu0
  %v203 = vadd.f32 0.0, %v202
  %204 = vmatmul.bf16.gmra.mxu0 %v79
  %v205 = vpop.f32.mrf.mxu0
  %v206 = vadd.f32 0.0, %v205
  %v207 = vpop.f32.mrf.mxu0
  %v208 = vadd.f32 0.0, %v207
  %209 = vmatmul.bf16.gmra.mxu0 %v80
  %v210 = vpop.f32.mrf.mxu0
  %v211 = vadd.f32 0.0, %v210
  %v212 = vpop.f32.mrf.mxu0
  %v213 = vadd.f32 0.0, %v212
  %214 = vdwg.mxu0
  %v215 = vadd.f32 %v102, %v176
  %v216 = vadd.f32 %v103, %v178
  %v217 = vadd.f32 %v104, %v181
  %v218 = vadd.f32 %v105, %v183
  %v219 = vadd.f32 %v106, %v186
  %v220 = vadd.f32 %v107, %v188
  %v221 = vadd.f32 %v108, %v191
  %v222 = vadd.f32 %v109, %v193
  %v223 = vadd.f32 %v110, %v196
  %v224 = vadd.f32 %v111, %v198
  %v225 = vadd.f32 %v112, %v201
  %v226 = vadd.f32 %v113, %v203
  %v227 = vadd.f32 %v114, %v206
  %v228 = vadd.f32 %v115, %v208
  %v229 = vadd.f32 %v116, %v211
  %v230 = vadd.f32 %v117, %v213
  %231 = vst [vmem:[#allocation2] sm:$0xff] %v215
  %232 = vst [vmem:[#allocation2 + $0x8] sm:$0xff] %v216
  %233 = vst [vmem:[#allocation2 + $0x10] sm:$0xff] %v217
  %234 = vst [vmem:[#allocation2 + $0x18] sm:$0xff] %v218
  %235 = vst [vmem:[#allocation2 + $0x20] sm:$0xff] %v219
  %236 = vst [vmem:[#allocation2 + $0x28] sm:$0xff] %v220
  %237 = vst [vmem:[#allocation2 + $0x30] sm:$0xff] %v221
  %238 = vst [vmem:[#allocation2 + $0x38] sm:$0xff] %v222
  %239 = vst [vmem:[#allocation2 + $0x40] sm:$0xff] %v223
  %240 = vst [vmem:[#allocation2 + $0x48] sm:$0xff] %v224
  %241 = vst [vmem:[#allocation2 + $0x50] sm:$0xff] %v225
  %242 = vst [vmem:[#allocation2 + $0x58] sm:$0xff] %v226
  %243 = vst [vmem:[#allocation2 + $0x60] sm:$0xff] %v227
  %244 = vst [vmem:[#allocation2 + $0x68] sm:$0xff] %v228
  %245 = vst [vmem:[#allocation2 + $0x70] sm:$0xff] %v229
  %246 = vst [vmem:[#allocation2 + $0x78] sm:$0xff] %v230
  // Predicated region
  $region22: #{_forward_padded.12} parent=0 // pred_check
    %p247 = pneg %p17
  $region23: #{_forward_padded.12} parent=0 // pred_check_branch
    %249 = sbr.rel (%p247) target = $region25
  $region24: #{_forward_padded.12} parent=0 // pred_region
    %v250 = vld [vmem:[%s2] sm:$0xff]
    %v251 = vld [vmem:[%s2 + $0x8] sm:$0xff]
    %v252 = vld [vmem:[%s2 + $0x10] sm:$0xff]
    %v253 = vld [vmem:[%s2 + $0x18] sm:$0xff]
    %v254 = vld [vmem:[%s2 + $0x20] sm:$0xff]
    %v255 = vld [vmem:[%s2 + $0x28] sm:$0xff]
    %v256 = vld [vmem:[%s2 + $0x30] sm:$0xff]
    %v257 = vld [vmem:[%s2 + $0x38] sm:$0xff]
    %v258 = vld [vmem:[%s2 + $0x40] sm:$0xff]
    %v259 = vld [vmem:[%s2 + $0x48] sm:$0xff]
    %v260 = vld [vmem:[%s2 + $0x50] sm:$0xff]
    %v261 = vld [vmem:[%s2 + $0x58] sm:$0xff]
    %v262 = vld [vmem:[%s2 + $0x60] sm:$0xff]
    %v263 = vld [vmem:[%s2 + $0x68] sm:$0xff]
    %v264 = vld [vmem:[%s2 + $0x70] sm:$0xff]
    %v265 = vld [vmem:[%s2 + $0x78] sm:$0xff]
    %v266 = vld [vmem:[#allocation2] sm:$0xff]
    %v267 = vld [vmem:[#allocation2 + $0x8] sm:$0xff]
    %v268 = vld [vmem:[#allocation2 + $0x10] sm:$0xff]
    %v269 = vld [vmem:[#allocation2 + $0x18] sm:$0xff]
    %v270 = vld [vmem:[#allocation2 + $0x20] sm:$0xff]
    %v271 = vld [vmem:[#allocation2 + $0x28] sm:$0xff]
    %v272 = vld [vmem:[#allocation2 + $0x30] sm:$0xff]
    %v273 = vld [vmem:[#allocation2 + $0x38] sm:$0xff]
    %v274 = vld [vmem:[#allocation2 + $0x40] sm:$0xff]
    %v275 = vld [vmem:[#allocation2 + $0x48] sm:$0xff]
    %v276 = vld [vmem:[#allocation2 + $0x50] sm:$0xff]
    %v277 = vld [vmem:[#allocation2 + $0x58] sm:$0xff]
    %v278 = vld [vmem:[#allocation2 + $0x60] sm:$0xff]
    %v279 = vld [vmem:[#allocation2 + $0x68] sm:$0xff]
    %v280 = vld [vmem:[#allocation2 + $0x70] sm:$0xff]
    %v281 = vld [vmem:[#allocation2 + $0x78] sm:$0xff]
    %283 = vset.pattern.permute.xlu0 0
    %284 = vperm.xlu0 %283, %v250
    %v285 = vpop.permute.xlu0 %284
    %288 = vset.pattern.permute.xlu0 0
    %289 = vperm.xlu0 %288, %v251
    %v290 = vpop.permute.xlu0 %289
    %293 = vset.pattern.permute.xlu0 0
    %294 = vperm.xlu0 %293, %v252
    %v295 = vpop.permute.xlu0 %294
    %298 = vset.pattern.permute.xlu0 0
    %299 = vperm.xlu0 %298, %v253
    %v300 = vpop.permute.xlu0 %299
    %303 = vset.pattern.permute.xlu0 0
    %304 = vperm.xlu0 %303, %v254
    %v305 = vpop.permute.xlu0 %304
    %308 = vset.pattern.permute.xlu0 0
    %309 = vperm.xlu0 %308, %v255
    %v310 = vpop.permute.xlu0 %309
    %313 = vset.pattern.permute.xlu0 0
    %314 = vperm.xlu0 %313, %v256
    %v315 = vpop.permute.xlu0 %314
    %318 = vset.pattern.permute.xlu0 0
    %319 = vperm.xlu0 %318, %v257
    %v320 = vpop.permute.xlu0 %319
    %323 = vset.pattern.permute.xlu0 0
    %324 = vperm.xlu0 %323, %v258
    %v325 = vpop.permute.xlu0 %324
    %328 = vset.pattern.permute.xlu0 0
    %329 = vperm.xlu0 %328, %v259
    %v330 = vpop.permute.xlu0 %329
    %333 = vset.pattern.permute.xlu0 0
    %334 = vperm.xlu0 %333, %v260
    %v335 = vpop.permute.xlu0 %334
    %338 = vset.pattern.permute.xlu0 0
    %339 = vperm.xlu0 %338, %v261
    %v340 = vpop.permute.xlu0 %339
    %343 = vset.pattern.permute.xlu0 0
    %344 = vperm.xlu0 %343, %v262
    %v345 = vpop.permute.xlu0 %344
    %348 = vset.pattern.permute.xlu0 0
    %349 = vperm.xlu0 %348, %v263
    %v350 = vpop.permute.xlu0 %349
    %353 = vset.pattern.permute.xlu0 0
    %354 = vperm.xlu0 %353, %v264
    %v355 = vpop.permute.xlu0 %354
    %358 = vset.pattern.permute.xlu0 0
    %359 = vperm.xlu0 %358, %v265
    %v360 = vpop.permute.xlu0 %359
    %v362 = vmul.f32 %v285, %v266
    %v363 = vmul.f32 %v290, %v267
    %v364 = vmul.f32 %v295, %v268
    %v365 = vmul.f32 %v300, %v269
    %v366 = vmul.f32 %v305, %v270
    %v367 = vmul.f32 %v310, %v271
    %v368 = vmul.f32 %v315, %v272
    %v369 = vmul.f32 %v320, %v273
    %v370 = vmul.f32 %v325, %v274
    %v371 = vmul.f32 %v330, %v275
    %v372 = vmul.f32 %v335, %v276
    %v373 = vmul.f32 %v340, %v277
    %v374 = vmul.f32 %v345, %v278
    %v375 = vmul.f32 %v350, %v279
    %v376 = vmul.f32 %v355, %v280
    %v377 = vmul.f32 %v360, %v281
    %v378 = vld [vmem:[%s3] sm:$0x1]
    %v380 = vperm.slane %v378, 0
    %v382 = vadd.f32 %v362, %v380
    %v383 = vadd.f32 %v363, %v380
    %v384 = vadd.f32 %v364, %v380
    %v385 = vadd.f32 %v365, %v380
    %v386 = vadd.f32 %v366, %v380
    %v387 = vadd.f32 %v367, %v380
    %v388 = vadd.f32 %v368, %v380
    %v389 = vadd.f32 %v369, %v380
    %v390 = vadd.f32 %v370, %v380
    %v391 = vadd.f32 %v371, %v380
    %v392 = vadd.f32 %v372, %v380
    %v393 = vadd.f32 %v373, %v380
    %v394 = vadd.f32 %v374, %v380
    %v395 = vadd.f32 %v375, %v380
    %v396 = vadd.f32 %v376, %v380
    %v397 = vadd.f32 %v377, %v380
    %398 = vst [vmem:[%s4] sm:$0xff] %v382
    %399 = vst [vmem:[%s4 + $0x8] sm:$0xff] %v383
    %400 = vst [vmem:[%s4 + $0x10] sm:$0xff] %v384
    %401 = vst [vmem:[%s4 + $0x18] sm:$0xff] %v385
    %402 = vst [vmem:[%s4 + $0x20] sm:$0xff] %v386
    %403 = vst [vmem:[%s4 + $0x28] sm:$0xff] %v387
    %404 = vst [vmem:[%s4 + $0x30] sm:$0xff] %v388
    %405 = vst [vmem:[%s4 + $0x38] sm:$0xff] %v389
    %406 = vst [vmem:[%s4 + $0x40] sm:$0xff] %v390
    %407 = vst [vmem:[%s4 + $0x48] sm:$0xff] %v391
    %408 = vst [vmem:[%s4 + $0x50] sm:$0xff] %v392
    %409 = vst [vmem:[%s4 + $0x58] sm:$0xff] %v393
    %410 = vst [vmem:[%s4 + $0x60] sm:$0xff] %v394
    %411 = vst [vmem:[%s4 + $0x68] sm:$0xff] %v395
    %412 = vst [vmem:[%s4 + $0x70] sm:$0xff] %v396
    %413 = vst [vmem:[%s4 + $0x78] sm:$0xff] %v397
  $region25: #{_forward_padded.12} parent=0 // pred_fallthru
    _
  // Predicated region
  $region26: #{_forward_padded.12} parent=0 // pred_check
    _
  $region27: #{_forward_padded.12} parent=0 // pred_check_branch
    %415 = sbr.rel (0) target = $region29
  $region28: #{_forward_padded.12} parent=0 // pred_region
    _
  $region29: #{_forward_padded.12} parent=0 // pred_fallthru
    _
  // Predicated region
  $region30: #{_forward_padded.12} parent=0 // pred_check
    _
  $region31: #{_forward_padded.12} parent=0 // pred_check_branch
    %417 = sbr.rel (0) target = $region33
  $region32: #{_forward_padded.12} parent=0 // pred_region
    _
  $region33: #{_forward_padded.12} parent=0 // pred_fallthru
    _

// kernel: _forward_padded.13
$region0: #{_forward_padded.13}
  #allocation0 [shape = 'u32[]', space=smem, size = 0x4, offset = 0x4, fixed_abs, tag = 'smem constant byte address 0x4 - core index']
  #allocation1 [shape = 'u32[72,128]{1,0:T(1,128)}', space=vmem, size = 0x9000, scoped, tag = 'internal scratch']
  #allocation2 [shape = 'f32[128,128]{1,0:T(8,128)}', space=vmem, size = 0x10000, scoped, tag = 'scratch operand']
  #allocation3 [shape = 'f32[128,128]{1,0:T(8,128)}', space=vmem, size = 0x10000, scoped, tag = 'scratch operand']
  #allocation4 [shape = 's32[1]{0}', space=sflag, size = 0x4, scoped, tag = 'scoped memory for _forward_padded.13']
  #allocation5 [shape = 'u8[512]{0}', space=smem, size = 0x200, scoped, tag = 'prefetched SMEM operand 0']
  #allocation6 [shape = 'u8[512]{0}', space=smem, size = 0x200, scoped, tag = 'prefetched SMEM operand 1']
  %s0 = inlined_call_operand.vmem [shape: s32[128], index: 0, kind: input, shape index: {}]
  %s1 = inlined_call_operand.vmem [shape: s32[128], index: 1, kind: input, shape index: {}]
  %s2 = inlined_call_operand.vmem [shape: f32[128,128], index: 2, kind: input, shape index: {}]
  %s3 = inlined_call_operand.hbm [shape: f32[1,128], index: 3, kind: output, shape index: {}]
  %s4 = sld [smem:[#allocation0]]
  $region21: #{_forward_padded.13} parent=0
    _
  %s6 = ssub.s32 1, %s4
  %s7 = scalar_select 0, %s6, %s4
  %s9 = sshll.u32 %s0, 4
  %s10 = int_to_ptr.vmem [resolvable:$true] %s9
  %12 = dma.vmem_to_smem %s10, 16, [#allocation5], [#allocation4]
  %s14 = sshll.u32 %s1, 4
  %s15 = int_to_ptr.vmem [resolvable:$true] %s14
  %17 = dma.vmem_to_smem %s15, 16, [#allocation6], [#allocation4]
  %19 = dma.done [#allocation4], 32
  %20 = sfence
  $region1: #{_forward_padded.13} parent=0
    #allocation7 [shape = 'u8[512]{0}', space=vmem, size = 0x400, scoped, tag = 'output window, operand 0, single buffered']
    #allocation8 [shape = 's32[1]{0}', space=sflag, size = 0x4, scoped, tag = 'scoped memory for _forward_padded.13']
    %21 = vsyncpa [#allocation8], 0
    // Predicated region
    $region2: #{_forward_padded.13} parent=1 // pred_check
      _
    $region3: #{_forward_padded.13} parent=1 // pred_check_branch
      %23 = sbr.rel (0) target = $region5
    $region4: #{_forward_padded.13} parent=1 // pred_region
      _
    $region5: #{_forward_padded.13} parent=1 // pred_fallthru
      _
    %s24 = smul.u32 0, 128
    loop: start=0, step=1, limit=128
    $region6: #{_forward_padded.13} parent=1 // loop_pre_header
      _
    $region7: #{_forward_padded.13} parent=1 // loop_header
      %s26 = sphi 0, %s30
      %p27 = scmp.ge.s32.totalorder %s26, 128
    $region8: #{_forward_padded.13} parent=1 // loop_header_branch
      %29 = sbr.rel (%p27) target = $region12
    $region9: #{_forward_padded.13} parent=1 // loop_body
      %s31 = sadd.s32 %s24, %s26
      %s32 = sld [smem:[#allocation5 + %s31]]
      %s33 = sld [smem:[#allocation6 + %s31]]
      %s34 = scalar_lea.vmem %s2, %s32
      %v35 = vld [vmem:[%s34] sm:$0x1]
      %s36 = scalar_lea.vmem [#allocation2], %s26
      %37 = vst [vmem:[%s36] sm:$0x1] %v35
      %s38 = scalar_lea.vmem %s2, %s33
      %v39 = vld [vmem:[%s38] sm:$0x1]
      %s40 = scalar_lea.vmem [#allocation3], %s26
      %41 = vst [vmem:[%s40] sm:$0x1] %v39
    $region10: #{_forward_padded.13} parent=1 // loop_footer
      %s30 = sadd.s32 1, %s26
    $region11: #{_forward_padded.13} parent=1 // loop_footer_branch
      %25 = sbr.rel target = $region7
    $region12: #{_forward_padded.13} parent=1 // loop_exit
      _
    %v42 = vld [vmem:[#allocation2] sm:$0xff]
    %v43 = vld [vmem:[#allocation2 + $0x8] sm:$0xff]
    %v44 = vld [vmem:[#allocation2 + $0x10] sm:$0xff]
    %v45 = vld [vmem:[#allocation2 + $0x18] sm:$0xff]
    %v46 = vld [vmem:[#allocation2 + $0x20] sm:$0xff]
    %v47 = vld [vmem:[#allocation2 + $0x28] sm:$0xff]
    %v48 = vld [vmem:[#allocation2 + $0x30] sm:$0xff]
    %v49 = vld [vmem:[#allocation2 + $0x38] sm:$0xff]
    %v50 = vld [vmem:[#allocation2 + $0x40] sm:$0xff]
    %v51 = vld [vmem:[#allocation2 + $0x48] sm:$0xff]
    %v52 = vld [vmem:[#allocation2 + $0x50] sm:$0xff]
    %v53 = vld [vmem:[#allocation2 + $0x58] sm:$0xff]
    %v54 = vld [vmem:[#allocation2 + $0x60] sm:$0xff]
    %v55 = vld [vmem:[#allocation2 + $0x68] sm:$0xff]
    %v56 = vld [vmem:[#allocation2 + $0x70] sm:$0xff]
    %v57 = vld [vmem:[#allocation2 + $0x78] sm:$0xff]
    %v58 = vld [vmem:[#allocation3] sm:$0xff]
    %v59 = vld [vmem:[#allocation3 + $0x8] sm:$0xff]
    %v60 = vld [vmem:[#allocation3 + $0x10] sm:$0xff]
    %v61 = vld [vmem:[#allocation3 + $0x18] sm:$0xff]
    %v62 = vld [vmem:[#allocation3 + $0x20] sm:$0xff]
    %v63 = vld [vmem:[#allocation3 + $0x28] sm:$0xff]
    %v64 = vld [vmem:[#allocation3 + $0x30] sm:$0xff]
    %v65 = vld [vmem:[#allocation3 + $0x38] sm:$0xff]
    %v66 = vld [vmem:[#allocation3 + $0x40] sm:$0xff]
    %v67 = vld [vmem:[#allocation3 + $0x48] sm:$0xff]
    %v68 = vld [vmem:[#allocation3 + $0x50] sm:$0xff]
    %v69 = vld [vmem:[#allocation3 + $0x58] sm:$0xff]
    %v70 = vld [vmem:[#allocation3 + $0x60] sm:$0xff]
    %v71 = vld [vmem:[#allocation3 + $0x68] sm:$0xff]
    %v72 = vld [vmem:[#allocation3 + $0x70] sm:$0xff]
    %v73 = vld [vmem:[#allocation3 + $0x78] sm:$0xff]
    %v74 = vmul.f32 %v42, %v58
    %v75 = vmul.f32 %v43, %v59
    %v76 = vmul.f32 %v44, %v60
    %v77 = vmul.f32 %v45, %v61
    %v78 = vmul.f32 %v46, %v62
    %v79 = vmul.f32 %v47, %v63
    %v80 = vmul.f32 %v48, %v64
    %v81 = vmul.f32 %v49, %v65
    %v82 = vmul.f32 %v50, %v66
    %v83 = vmul.f32 %v51, %v67
    %v84 = vmul.f32 %v52, %v68
    %v85 = vmul.f32 %v53, %v69
    %v86 = vmul.f32 %v54, %v70
    %v87 = vmul.f32 %v55, %v71
    %v88 = vmul.f32 %v56, %v72
    %v89 = vmul.f32 %v57, %v73
    %90 = vmatpush.xpose.msra.mxu0 %v89
    %91 = vmatpush.xpose.msra.mxu0 %v88
    %92 = vmatpush.xpose.msra.mxu0 %v87
    %93 = vmatpush.xpose.msra.mxu0 %v86
    %94 = vmatpush.xpose.msra.mxu0 %v85
    %95 = vmatpush.xpose.msra.mxu0 %v84
    %96 = vmatpush.xpose.msra.mxu0 %v83
    %97 = vmatpush.xpose.msra.mxu0 %v82
    %98 = vmatpush.xpose.msra.mxu0 %v81
    %99 = vmatpush.xpose.msra.mxu0 %v80
    %100 = vmatpush.xpose.msra.mxu0 %v79
    %101 = vmatpush.xpose.msra.mxu0 %v78
    %102 = vmatpush.xpose.msra.mxu0 %v77
    %103 = vmatpush.xpose.msra.mxu0 %v76
    %104 = vmatpush.xpose.msra.mxu0 %v75
    %105 = vmatpush.xpose.msra.mxu0 %v74
    %106 = vmatmul.f32.gmra.mxu0 1.0
    %v107 = vpop.f32.mrf.mxu0
    %v108 = vadd.f32 0.0, %v107
    %109 = vdwg.mxu0
    %110 = vst [vmem:[#allocation7] sm:$0x1] %v108
    // Predicated region
    $region13: #{_forward_padded.13} parent=1 // pred_check
      _
    $region14: #{_forward_padded.13} parent=1 // pred_check_branch
      %112 = sbr.rel (0) target = $region16
    $region15: #{_forward_padded.13} parent=1 // pred_region
      %114 = vsyncadd [#allocation8], 0
      %s116 = sshll.u32 [#allocation7], 4
      %s117 = int_to_ptr.vmem [resolvable:$true] %s116
      %s118 = sshll.u32 %s3, 4
      %s119 = int_to_ptr.hbm [resolvable:$true] %s118
      %121 = dma.vmem_to_hbm [thread:$0]  %s117, 16, %s119, [#allocation8]
    $region16: #{_forward_padded.13} parent=1 // pred_fallthru
      _
    // Predicated region
    $region17: #{_forward_padded.13} parent=1 // pred_check
      _
    $region18: #{_forward_padded.13} parent=1 // pred_check_branch
      %123 = sbr.rel (0) target = $region20
    $region19: #{_forward_padded.13} parent=1 // pred_region
      %125 = dma.done [#allocation8], 16
    $region20: #{_forward_padded.13} parent=1 // pred_fallthru
      _
    %126 = vsyncpa [#allocation8], 1

</llo_original>
